<compile_context>
chip_gen: v5e
topology: v5e:2x2
jax: 0.10.0
libtpu: 0.0.40
codegen_flags: <defaults>
</compile_context>

<pallas_src>
from functools import partial

import jax
import jax.numpy as jnp
from jax.experimental import pallas as pl
from jax.experimental.pallas import tpu as pltpu

IN_HALF = 174                 # each half of the input
HID = 256                     # MLP1 / MLP2 hidden width
OUT8 = 8                      # MLP1 / MLP2 output width
FUSE_IN = 2 * OUT8 + 1        # 17
TOTAL_IN = 2 * IN_HALF + 1    # 349

# Lane offsets inside the packed "small" parameter vector ([1, 128]).
_OFF_B2 = 0      # [16]  bias of fused layer-2 (b2a ++ b2b)
_OFF_WL16 = 16   # [16]  final-linear weights for the 16 MLP1/MLP2 outputs
_OFF_W3A = 32    # [8]   MLP3 layer-1 weight (Linear(1,8) row)
_OFF_B3A = 40    # [8]   MLP3 layer-1 bias
_OFF_W3B = 48    # [8]   MLP3 layer-2 weight (Linear(8,1) column)
_OFF_B3B = 56    # [1]   MLP3 layer-2 bias
_OFF_WLD = 57    # [1]   final-linear weight for the MLP3 output
_OFF_BL = 58     # [1]   final-linear bias


def _round_up(n, m):
    return ((n + m - 1) // m) * m


# ----------------------------------------------------------------------------
# Kernel
# ----------------------------------------------------------------------------
def model_kernel(
    x_ref,        # [TB, 349] f32
    w1_ref,       # [349, 512] bf16   block-diagonal MLP1/MLP2 layer 1
    b1_ref,       # [1, 512]   f32
    w2_ref,       # [512, 16]  bf16   block-diagonal MLP1/MLP2 layer 2
    small_ref,    # [1, 128]   f32    packed small params (see _OFF_* above)
    out_ref,      # [TB, 1]    f32
):
    x = x_ref[...]                               # [TB, 349] f32, lane-aligned load
    xb = x.astype(jnp.bfloat16)                  # MXU operand dtype
    d = x[:, TOTAL_IN - 1:]                      # [TB, 1] f32 (last column, kept f32)

    small = small_ref[...]                       # [1, 128] f32, one vreg
    b2 = small[:, _OFF_B2:_OFF_B2 + 16]          # [1, 16]
    wl16 = small[:, _OFF_WL16:_OFF_WL16 + 16]    # [1, 16]
    w3a = small[:, _OFF_W3A:_OFF_W3A + 8]        # [1, 8]
    b3a = small[:, _OFF_B3A:_OFF_B3A + 8]        # [1, 8]
    w3b = small[:, _OFF_W3B:_OFF_W3B + 8]        # [1, 8]
    b3b = small[:, _OFF_B3B:_OFF_B3B + 1]        # [1, 1]
    wl_d = small[:, _OFF_WLD:_OFF_WLD + 1]       # [1, 1]
    bl = small[:, _OFF_BL:_OFF_BL + 1]           # [1, 1]

    # Fused MLP1 + MLP2 on the MXU (bf16 operands, f32 accumulation).
    h = jnp.maximum(
        jnp.dot(xb, w1_ref[...], preferred_element_type=jnp.float32) + b1_ref[...],
        0.0,
    )                                            # [TB, 512] f32
    hb = h.astype(jnp.bfloat16)                  # keep intermediate in bf16
    h2 = jnp.maximum(
        jnp.dot(hb, w2_ref[...], preferred_element_type=jnp.float32) + b2,
        0.0,
    )                                            # [TB, 16] == concat(MLP1(x1), MLP2(x2))

    # MLP3 on the VPU/XLU: Linear(1,8) is an outer product, Linear(8,1) an 8-lane reduce.
    h3a = jnp.maximum(d * w3a + b3a, 0.0)                                       # [TB, 8]
    h3 = jnp.maximum(
        jnp.sum(h3a * w3b, axis=-1, keepdims=True) + b3b, 0.0
    )                                            # [TB, 1]

    # Final Linear(17, 1), decomposed so no concat is needed.
    y = jnp.sum(h2 * wl16, axis=-1, keepdims=True) + h3 * wl_d + bl             # [TB, 1]
    out_ref[...] = y


# ----------------------------------------------------------------------------
# Parameter fusion / packing
# ----------------------------------------------------------------------------
def fuse_params(params):
    """Pack the 7 Linear layers into the fused tensors the kernel consumes."""
    (w1a, b1a, w2a, b2a,
     w1b, b1b, w2b, b2b,
     w3a, b3a, w3b, b3b,
     wl, bl) = params

    # Block-diagonal layer 1: [349, 512], row 348 (the 'd' column) stays zero.
    w1blk = jnp.zeros((TOTAL_IN, 2 * HID), jnp.float32)
    w1blk = w1blk.at[:IN_HALF, :HID].set(w1a)
    w1blk = w1blk.at[IN_HALF:2 * IN_HALF, HID:].set(w1b)
    w1blk = w1blk.astype(jnp.bfloat16)
    b1blk = jnp.concatenate([b1a, b1b], axis=1)                  # [1, 512] f32

    # Block-diagonal layer 2: [512, 16].
    w2blk = jnp.zeros((2 * HID, 2 * OUT8), jnp.float32)
    w2blk = w2blk.at[:HID, :OUT8].set(w2a)
    w2blk = w2blk.at[HID:, OUT8:].set(w2b)
    w2blk = w2blk.astype(jnp.bfloat16)

    # All tiny operands packed into one [1, 128] f32 vector (single vreg, single DMA).
    small = jnp.zeros((1, 128), jnp.float32)
    small = small.at[0, _OFF_B2:_OFF_B2 + 16].set(
        jnp.concatenate([b2a, b2b], axis=1)[0])
    small = small.at[0, _OFF_WL16:_OFF_WL16 + 16].set(wl[:2 * OUT8, 0])
    small = small.at[0, _OFF_W3A:_OFF_W3A + 8].set(w3a[0])       # w3a: [1, 8]
    small = small.at[0, _OFF_B3A:_OFF_B3A + 8].set(b3a[0])       # b3a: [1, 8]
    small = small.at[0, _OFF_W3B:_OFF_W3B + 8].set(w3b[:, 0])    # w3b: [8, 1]
    small = small.at[0, _OFF_B3B].set(b3b[0, 0])
    small = small.at[0, _OFF_WLD].set(wl[2 * OUT8, 0])
    small = small.at[0, _OFF_BL].set(bl[0, 0])

    return (w1blk, b1blk, w2blk, small)


# ----------------------------------------------------------------------------
# Wrapper
# ----------------------------------------------------------------------------
def model_forward(x, fused_params, *, tile_b=1024):
    """x: [B, 349] f32 -> [B, 1] f32, batch-tiled and pipelined."""
    w1blk, b1blk, w2blk, small = fused_params
    B = x.shape[0]

    # Cap the tile so the "parallel" batch axis produces >= 2 grid steps when B allows
    # it (keeps both v7x TensorCores busy); harmless on single-TC v5e/v6e.
    half = _round_up(-(-B // 2), 8)
    tb = max(8, min(_round_up(tile_b, 8), half))
    grid = (pl.cdiv(B, tb),)

    x_spec = pl.BlockSpec((tb, TOTAL_IN), lambda i: (i, 0))
    out_spec = pl.BlockSpec((tb, 1), lambda i: (i, 0))
    # Weights: constant index_map -> DMA'd once, resident in VMEM across grid steps.
    w1_spec = pl.BlockSpec(w1blk.shape, lambda i: (0, 0))
    b1_spec = pl.BlockSpec(b1blk.shape, lambda i: (0, 0))
    w2_spec = pl.BlockSpec(w2blk.shape, lambda i: (0, 0))
    sm_spec = pl.BlockSpec(small.shape, lambda i: (0, 0))

    return pl.pallas_call(
        model_kernel,
        out_shape=jax.ShapeDtypeStruct((B, 1), jnp.float32),
        grid_spec=pltpu.PrefetchScalarGridSpec(
            num_scalar_prefetch=0,
            grid=grid,
            in_specs=[x_spec, w1_spec, b1_spec, w2_spec, sm_spec],
            out_specs=out_spec,
        ),
        compiler_params=pltpu.CompilerParams(
            dimension_semantics=("parallel",),        # megacore sharding on v7x
            vmem_limit_bytes=32 * 1024 * 1024,        # above v5e's 16 MiB scoped default
        ),
    )(x, w1blk, b1blk, w2blk, small)


@partial(jax.jit, static_argnames=("tile_b",))
def run(x, params, tile_b=1024):
    return model_forward(x, fuse_params(params), tile_b=tile_b)


# ----------------------------------------------------------------------------
# Parameter init (PyTorch-Linear-style uniform bounds) and pure-JAX reference
# ----------------------------------------------------------------------------
def init_params(key):
    def linear(key, fan_in, fan_out):
        kw, kb = jax.random.split(key)
        bound = 1.0 / jnp.sqrt(fan_in)
        w = jax.random.uniform(kw, (fan_in, fan_out), jnp.float32, -bound, bound)
        b = jax.random.uniform(kb, (1, fan_out), jnp.float32, -bound, bound)
        return w, b

    keys = jax.random.split(key, 7)
    w1a, b1a = linear(keys[0], IN_HALF, HID)
    w2a, b2a = linear(keys[1], HID, OUT8)
    w1b, b1b = linear(keys[2], IN_HALF, HID)
    w2b, b2b = linear(keys[3], HID, OUT8)
    w3a, b3a = linear(keys[4], 1, OUT8)
    w3b, b3b = linear(keys[5], OUT8, 1)
    wl, bl = linear(keys[6], FUSE_IN, 1)
    return (w1a, b1a, w2a, b2a,
            w1b, b1b, w2b, b2b,
            w3a, b3a, w3b, b3b,
            wl, bl)


def reference_forward(x, params):
    (w1a, b1a, w2a, b2a,
     w1b, b1b, w2b, b2b,
     w3a, b3a, w3b, b3b,
     wl, bl) = params
    x1 = x[:, :IN_HALF]
    x2 = x[:, IN_HALF:2 * IN_HALF]
    d = x[:, 2 * IN_HALF:2 * IN_HALF + 1]

    def mlp(v, w1, b1, w2, b2):
        h = jnp.maximum(v @ w1 + b1, 0.0)
        return jnp.maximum(h @ w2 + b2, 0.0)

    h1 = mlp(x1, w1a, b1a, w2a, b2a)
    h2 = mlp(x2, w1b, b1b, w2b, b2b)
    h3 = mlp(d, w3a, b3a, w3b, b3b)
    cat = jnp.concatenate([h1, h2, h3], axis=1)
    return cat @ wl + bl


if __name__ == "__main__":
    key = jax.random.PRNGKey(0)
    kx, kp = jax.random.split(key)

    # Small demo shapes; tile_b=32 forces a multi-step grid (including a partial last
    # block) so the pipelined / resident-weight path is actually exercised.
    B = 80
    x = jax.random.normal(kx, (B, TOTAL_IN), dtype=jnp.float32)
    params = init_params(kp)
    ref = reference_forward(x, params)

    # bf16 matmul operands with f32 accumulation -> relaxed tolerance vs. the f32 reference.
    out_small = jax.block_until_ready(run(x, params, tile_b=32))
    assert out_small.shape == (B, 1), out_small.shape
    assert jnp.allclose(out_small, ref, atol=3e-2, rtol=3e-2)

    out_default = jax.block_until_ready(run(x, params))
    assert out_default.shape == (B, 1), out_default.shape
    assert jnp.allclose(out_default, ref, atol=3e-2, rtol=3e-2)

    print("KERNEL_OK")
</pallas_src>

<mosaic_0001>
module attributes {stable_mosaic.version = 11 : i64} {
  func.func @model_kernel(%arg0: i32, %arg1: memref<32x349xf32, #tpu.memory_space<vmem>>, %arg2: memref<349x512xbf16, #tpu.memory_space<vmem>>, %arg3: memref<1x512xf32, #tpu.memory_space<vmem>>, %arg4: memref<512x16xbf16, #tpu.memory_space<vmem>>, %arg5: memref<1x128xf32, #tpu.memory_space<vmem>>, %arg6: memref<32x1xf32, #tpu.memory_space<vmem>>) attributes {dimension_semantics = [#tpu.dimension_semantics<parallel>], iteration_bounds = array<i64: 3>, scalar_prefetch = 0 : i64, scratch_operands = 0 : i64, tpu.core_type = #tpu.core_type<tc>, window_params = [{transform_indices = @transform_0, window_bounds = array<i64: 32, 349>}, {pipeline_mode = #tpu.pipeline_mode<synchronous>, transform_indices = @transform_1, window_bounds = array<i64: 349, 512>}, {pipeline_mode = #tpu.pipeline_mode<synchronous>, transform_indices = @transform_2, window_bounds = array<i64: 1, 512>}, {pipeline_mode = #tpu.pipeline_mode<synchronous>, transform_indices = @transform_3, window_bounds = array<i64: 512, 16>}, {pipeline_mode = #tpu.pipeline_mode<synchronous>, transform_indices = @transform_4, window_bounds = array<i64: 1, 128>}, {transform_indices = @transform_5, window_bounds = array<i64: 32, 1>}]} {
    %c0 = arith.constant 0 : index
    %c0_0 = arith.constant 0 : index
    %0 = vector.load %arg1[%c0, %c0_0] : memref<32x349xf32, #tpu.memory_space<vmem>>, vector<32x349xf32>
    %1 = arith.truncf %0 : vector<32x349xf32> to vector<32x349xbf16>
    %2 = vector.extract_strided_slice %0 {offsets = [0, 348], sizes = [32, 1], strides = [1, 1]} : vector<32x349xf32> to vector<32x1xf32>
    %c0_1 = arith.constant 0 : index
    %c0_2 = arith.constant 0 : index
    %3 = vector.load %arg5[%c0_1, %c0_2] : memref<1x128xf32, #tpu.memory_space<vmem>>, vector<1x128xf32>
    %4 = vector.extract_strided_slice %3 {offsets = [0, 0], sizes = [1, 16], strides = [1, 1]} : vector<1x128xf32> to vector<1x16xf32>
    %5 = vector.extract_strided_slice %3 {offsets = [0, 16], sizes = [1, 16], strides = [1, 1]} : vector<1x128xf32> to vector<1x16xf32>
    %6 = vector.extract_strided_slice %3 {offsets = [0, 32], sizes = [1, 8], strides = [1, 1]} : vector<1x128xf32> to vector<1x8xf32>
    %7 = vector.extract_strided_slice %3 {offsets = [0, 40], sizes = [1, 8], strides = [1, 1]} : vector<1x128xf32> to vector<1x8xf32>
    %8 = vector.extract_strided_slice %3 {offsets = [0, 48], sizes = [1, 8], strides = [1, 1]} : vector<1x128xf32> to vector<1x8xf32>
    %9 = vector.extract_strided_slice %3 {offsets = [0, 56], sizes = [1, 1], strides = [1, 1]} : vector<1x128xf32> to vector<1x1xf32>
    %10 = vector.extract_strided_slice %3 {offsets = [0, 57], sizes = [1, 1], strides = [1, 1]} : vector<1x128xf32> to vector<1x1xf32>
    %11 = vector.extract_strided_slice %3 {offsets = [0, 58], sizes = [1, 1], strides = [1, 1]} : vector<1x128xf32> to vector<1x1xf32>
    %c0_3 = arith.constant 0 : index
    %c0_4 = arith.constant 0 : index
    %12 = vector.load %arg2[%c0_3, %c0_4] : memref<349x512xbf16, #tpu.memory_space<vmem>>, vector<349x512xbf16>
    %cst = arith.constant dense<0.000000e+00> : vector<32x512xf32>
    %13 = tpu.matmul %1, %12, %cst {dimension_numbers = #tpu.dot_dimension_numbers<[1], [0], [0], [1], [0, 0, 1, 1], [], []>} : vector<32x349xbf16>, vector<349x512xbf16>, vector<32x512xf32> -> vector<32x512xf32>
    %c0_5 = arith.constant 0 : index
    %c0_6 = arith.constant 0 : index
    %14 = vector.load %arg3[%c0_5, %c0_6] : memref<1x512xf32, #tpu.memory_space<vmem>>, vector<1x512xf32>
    %15 = vector.broadcast %14 : vector<1x512xf32> to vector<32x512xf32>
    %16 = arith.addf %13, %15 : vector<32x512xf32>
    %cst_7 = arith.constant 0.000000e+00 : f32
    %17 = vector.broadcast %cst_7 : f32 to vector<32x512xf32>
    %18 = arith.maximumf %16, %17 : vector<32x512xf32>
    %19 = arith.truncf %18 : vector<32x512xf32> to vector<32x512xbf16>
    %c0_8 = arith.constant 0 : index
    %c0_9 = arith.constant 0 : index
    %20 = vector.load %arg4[%c0_8, %c0_9] : memref<512x16xbf16, #tpu.memory_space<vmem>>, vector<512x16xbf16>
    %cst_10 = arith.constant dense<0.000000e+00> : vector<32x16xf32>
    %21 = tpu.matmul %19, %20, %cst_10 {dimension_numbers = #tpu.dot_dimension_numbers<[1], [0], [0], [1], [0, 0, 1, 1], [], []>} : vector<32x512xbf16>, vector<512x16xbf16>, vector<32x16xf32> -> vector<32x16xf32>
    %22 = vector.broadcast %4 : vector<1x16xf32> to vector<32x16xf32>
    %23 = arith.addf %21, %22 : vector<32x16xf32>
    %cst_11 = arith.constant 0.000000e+00 : f32
    %24 = vector.broadcast %cst_11 : f32 to vector<32x16xf32>
    %25 = arith.maximumf %23, %24 : vector<32x16xf32>
    %26 = vector.broadcast %2 : vector<32x1xf32> to vector<32x8xf32>
    %27 = vector.broadcast %6 : vector<1x8xf32> to vector<32x8xf32>
    %28 = arith.mulf %26, %27 : vector<32x8xf32>
    %29 = vector.broadcast %7 : vector<1x8xf32> to vector<32x8xf32>
    %30 = arith.addf %28, %29 : vector<32x8xf32>
    %cst_12 = arith.constant 0.000000e+00 : f32
    %31 = vector.broadcast %cst_12 : f32 to vector<32x8xf32>
    %32 = arith.maximumf %30, %31 : vector<32x8xf32>
    %33 = vector.broadcast %8 : vector<1x8xf32> to vector<32x8xf32>
    %34 = arith.mulf %32, %33 : vector<32x8xf32>
    %cst_13 = arith.constant dense<0.000000e+00> : vector<32xf32>
    %35 = vector.multi_reduction <add>, %34, %cst_13 [1] : vector<32x8xf32> to vector<32xf32>
    %36 = vector.shape_cast %35 : vector<32xf32> to vector<32x1xf32>
    %37 = vector.broadcast %9 : vector<1x1xf32> to vector<32x1xf32>
    %38 = arith.addf %36, %37 : vector<32x1xf32>
    %cst_14 = arith.constant 0.000000e+00 : f32
    %39 = vector.broadcast %cst_14 : f32 to vector<32x1xf32>
    %40 = arith.maximumf %38, %39 : vector<32x1xf32>
    %41 = vector.broadcast %5 : vector<1x16xf32> to vector<32x16xf32>
    %42 = arith.mulf %25, %41 : vector<32x16xf32>
    %cst_15 = arith.constant dense<0.000000e+00> : vector<32xf32>
    %43 = vector.multi_reduction <add>, %42, %cst_15 [1] : vector<32x16xf32> to vector<32xf32>
    %44 = vector.shape_cast %43 : vector<32xf32> to vector<32x1xf32>
    %45 = vector.broadcast %10 : vector<1x1xf32> to vector<32x1xf32>
    %46 = arith.mulf %40, %45 : vector<32x1xf32>
    %47 = arith.addf %44, %46 : vector<32x1xf32>
    %48 = vector.broadcast %11 : vector<1x1xf32> to vector<32x1xf32>
    %49 = arith.addf %47, %48 : vector<32x1xf32>
    %c0_16 = arith.constant 0 : index
    %c0_17 = arith.constant 0 : index
    %50 = vector.load %arg6[%c0_16, %c0_17] : memref<32x1xf32, #tpu.memory_space<vmem>>, vector<32x1xf32>
    tpu.vector_store %arg6[%c0_16, %c0_17], %49 {strides = array<i32>} : memref<32x1xf32, #tpu.memory_space<vmem>>, vector<32x1xf32>,
    return
  }
  func.func @transform_0(%arg0: i32) -> (i32, i32) {
    %c0_i32 = arith.constant 0 : i32
    %c0_i32_0 = arith.constant 0 : i32
    return %arg0, %c0_i32 : i32, i32
  }
  func.func @transform_1(%arg0: i32) -> (i32, i32) {
    %c0_i32 = arith.constant 0 : i32
    %c0_i32_0 = arith.constant 0 : i32
    %c0_i32_1 = arith.constant 0 : i32
    return %c0_i32, %c0_i32_0 : i32, i32
  }
  func.func @transform_2(%arg0: i32) -> (i32, i32) {
    %c0_i32 = arith.constant 0 : i32
    %c0_i32_0 = arith.constant 0 : i32
    %c0_i32_1 = arith.constant 0 : i32
    return %c0_i32, %c0_i32_0 : i32, i32
  }
  func.func @transform_3(%arg0: i32) -> (i32, i32) {
    %c0_i32 = arith.constant 0 : i32
    %c0_i32_0 = arith.constant 0 : i32
    %c0_i32_1 = arith.constant 0 : i32
    return %c0_i32, %c0_i32_0 : i32, i32
  }
  func.func @transform_4(%arg0: i32) -> (i32, i32) {
    %c0_i32 = arith.constant 0 : i32
    %c0_i32_0 = arith.constant 0 : i32
    %c0_i32_1 = arith.constant 0 : i32
    return %c0_i32, %c0_i32_0 : i32, i32
  }
  func.func @transform_5(%arg0: i32) -> (i32, i32) {
    %c0_i32 = arith.constant 0 : i32
    %c0_i32_0 = arith.constant 0 : i32
    return %arg0, %c0_i32 : i32, i32
  }
}

</mosaic_0001>

<llo_original>
// kernel: run.1
$region0: #{run.1}
  #allocation0 [shape = 'u32[]', space=smem, size = 0x4, offset = 0x4, fixed_abs, tag = 'smem constant byte address 0x4 - core index']
  #allocation1 [shape = 'u32[72,128]{1,0:T(1,128)}', space=vmem, size = 0x9000, scoped, tag = 'internal scratch']
  %s0 = inlined_call_operand.vmem [shape: f32[80,349], index: 0, kind: input, shape index: {}]
  %s1 = inlined_call_operand.vmem [shape: bf16[349,512], index: 1, kind: input, shape index: {}]
  %s2 = inlined_call_operand.vmem [shape: f32[1,512], index: 2, kind: input, shape index: {}]
  %s3 = inlined_call_operand.vmem [shape: bf16[512,16], index: 3, kind: input, shape index: {}]
  %s4 = inlined_call_operand.vmem [shape: f32[1,128], index: 4, kind: input, shape index: {}]
  %s5 = inlined_call_operand.vmem [shape: f32[80,1], index: 5, kind: output, shape index: {}]
  %s6 = sld [smem:[#allocation0]]
  $region101: #{run.1} parent=0
    _
  %s8 = ssub.s32 1, %s6
  %s9 = scalar_select 0, %s8, %s6
  $region1: #{run.1} parent=0
    #allocation2 [shape = 'u8[32768]{0}', space=vmem, size = 0x8000, scoped, tag = 'output window, operand 0']
    loop: start=0, step=1, limit=5
    $region2: #{run.1} parent=1 // loop_pre_header
      _
    $region3: #{run.1} parent=1 // loop_header
      %s11 = sphi 0, %s15
      %p12 = scmp.ge.s32.totalorder %s11, 5
      %s21 = sphi 0, %s23
      %s24 = sphi 0, %s21
      %s25 = sphi 0, %s24
      %s41 = sphi 0, %s25
      %s45 = sphi 0, %s45
      %s47 = sphi 0, %s45
      %s48 = sphi 0, %s47
      %s62 = sphi 0, %s48
      %s66 = sphi 0, %s66
      %s68 = sphi 0, %s66
      %s69 = sphi 0, %s68
      %s83 = sphi 0, %s69
      %s87 = sphi 0, %s87
      %s89 = sphi 0, %s87
      %s90 = sphi 0, %s89
      %s104 = sphi 0, %s90
      %s108 = sphi 0, %s108
      %s110 = sphi 0, %s108
      %s111 = sphi 0, %s110
      %s125 = sphi 0, %s111
      %s131 = sphi 0, %s133
      %s134 = sphi 0, %s131
      %s135 = sphi 0, %s134
      %s151 = sphi 0, %s135
    $region4: #{run.1} parent=1 // loop_header_branch
      %14 = sbr.rel (%p12) target = $region8
    $region5: #{run.1} parent=1 // loop_body
      %s16 = ssub.s32 %s11, 1
      %s17 = ssub.s32 %s11, 2
      %s18 = sadd.s32 %s11, 1
      %s19 = ssub.s32 %s11, %s18
      %p20 = scmp.eq.s32.totalorder %s19, 0
      %s22 = sadd.s32 %s21, 1
      %s23 = scalar_select %p20, %s21, %s22
      %p26 = pneg %p20
      %p27 = scmp.eq.s32.totalorder %s11, 2
      %p28 = por %p26, %p27
      %p29 = scmp.ne.s32.totalorder %s21, %s24
      %p30 = scmp.eq.s32.totalorder %s11, 0
      %p31 = por %p29, %p30
      %p32 = scmp.ne.s32.totalorder %s21, %s24
      %p33 = scmp.eq.s32.totalorder %s16, 2
      %p34 = por %p32, %p33
      %p35 = scmp.ne.s32.totalorder %s24, %s25
      %p36 = scmp.eq.s32.totalorder %s16, 0
      %p37 = por %p35, %p36
      %p38 = scmp.ne.s32.totalorder %s24, %s25
      %p39 = scmp.eq.s32.totalorder %s17, 2
      %p40 = por %p38, %p39
      %p42 = scmp.ne.s32.totalorder %s25, %s41
      %p43 = scmp.eq.s32.totalorder %s17, 0
      %p44 = por %p42, %p43
      %s46 = sadd.s32 %s45, 1
      %p49 = scmp.eq.s32.totalorder %s11, 2
      %p50 = scmp.ne.s32.totalorder %s45, %s47
      %p51 = scmp.eq.s32.totalorder %s11, 0
      %p52 = por %p50, %p51
      %p53 = scmp.ne.s32.totalorder %s45, %s47
      %p54 = scmp.eq.s32.totalorder %s16, 2
      %p55 = por %p53, %p54
      %p56 = scmp.ne.s32.totalorder %s47, %s48
      %p57 = scmp.eq.s32.totalorder %s16, 0
      %p58 = por %p56, %p57
      %p59 = scmp.ne.s32.totalorder %s47, %s48
      %p60 = scmp.eq.s32.totalorder %s17, 2
      %p61 = por %p59, %p60
      %p63 = scmp.ne.s32.totalorder %s48, %s62
      %p64 = scmp.eq.s32.totalorder %s17, 0
      %p65 = por %p63, %p64
      %s67 = sadd.s32 %s66, 1
      %p70 = scmp.eq.s32.totalorder %s11, 2
      %p71 = scmp.ne.s32.totalorder %s66, %s68
      %p72 = scmp.eq.s32.totalorder %s11, 0
      %p73 = por %p71, %p72
      %p74 = scmp.ne.s32.totalorder %s66, %s68
      %p75 = scmp.eq.s32.totalorder %s16, 2
      %p76 = por %p74, %p75
      %p77 = scmp.ne.s32.totalorder %s68, %s69
      %p78 = scmp.eq.s32.totalorder %s16, 0
      %p79 = por %p77, %p78
      %p80 = scmp.ne.s32.totalorder %s68, %s69
      %p81 = scmp.eq.s32.totalorder %s17, 2
      %p82 = por %p80, %p81
      %p84 = scmp.ne.s32.totalorder %s69, %s83
      %p85 = scmp.eq.s32.totalorder %s17, 0
      %p86 = por %p84, %p85
      %s88 = sadd.s32 %s87, 1
      %p91 = scmp.eq.s32.totalorder %s11, 2
      %p92 = scmp.ne.s32.totalorder %s87, %s89
      %p93 = scmp.eq.s32.totalorder %s11, 0
      %p94 = por %p92, %p93
      %p95 = scmp.ne.s32.totalorder %s87, %s89
      %p96 = scmp.eq.s32.totalorder %s16, 2
      %p97 = por %p95, %p96
      %p98 = scmp.ne.s32.totalorder %s89, %s90
      %p99 = scmp.eq.s32.totalorder %s16, 0
      %p100 = por %p98, %p99
      %p101 = scmp.ne.s32.totalorder %s89, %s90
      %p102 = scmp.eq.s32.totalorder %s17, 2
      %p103 = por %p101, %p102
      %p105 = scmp.ne.s32.totalorder %s90, %s104
      %p106 = scmp.eq.s32.totalorder %s17, 0
      %p107 = por %p105, %p106
      %s109 = sadd.s32 %s108, 1
      %p112 = scmp.eq.s32.totalorder %s11, 2
      %p113 = scmp.ne.s32.totalorder %s108, %s110
      %p114 = scmp.eq.s32.totalorder %s11, 0
      %p115 = por %p113, %p114
      %p116 = scmp.ne.s32.totalorder %s108, %s110
      %p117 = scmp.eq.s32.totalorder %s16, 2
      %p118 = por %p116, %p117
      %p119 = scmp.ne.s32.totalorder %s110, %s111
      %p120 = scmp.eq.s32.totalorder %s16, 0
      %p121 = por %p119, %p120
      %p122 = scmp.ne.s32.totalorder %s110, %s111
      %p123 = scmp.eq.s32.totalorder %s17, 2
      %p124 = por %p122, %p123
      %p126 = scmp.ne.s32.totalorder %s111, %s125
      %p127 = scmp.eq.s32.totalorder %s17, 0
      %p128 = por %p126, %p127
      %s129 = ssub.s32 %s11, %s18
      %p130 = scmp.eq.s32.totalorder %s129, 0
      %s132 = sadd.s32 %s131, 1
      %s133 = scalar_select %p130, %s131, %s132
      %p136 = pneg %p130
      %p137 = scmp.eq.s32.totalorder %s11, 2
      %p138 = por %p136, %p137
      %p139 = scmp.ne.s32.totalorder %s131, %s134
      %p140 = scmp.eq.s32.totalorder %s11, 0
      %p141 = por %p139, %p140
      %p142 = scmp.ne.s32.totalorder %s131, %s134
      %p143 = scmp.eq.s32.totalorder %s16, 2
      %p144 = por %p142, %p143
      %p145 = scmp.ne.s32.totalorder %s134, %s135
      %p146 = scmp.eq.s32.totalorder %s16, 0
      %p147 = por %p145, %p146
      %p148 = scmp.ne.s32.totalorder %s134, %s135
      %p149 = scmp.eq.s32.totalorder %s17, 2
      %p150 = por %p148, %p149
      %p152 = scmp.ne.s32.totalorder %s135, %s151
      %p153 = scmp.eq.s32.totalorder %s17, 0
      %p154 = por %p152, %p153
      %p155 = scmp.le.s32.totalorder 1, %s11
      %p156 = scmp.lt.s32.totalorder %s11, 4
      %p157 = pnand %p155, %p156
      %p158 = pneg %p157
      // Predicated region
      $region9: #{run.1} parent=5 // pred_check
        _
      $region10: #{run.1} parent=5 // pred_check_branch
        %160 = sbr.rel (%p157) target = $region12
      $region11: #{run.1} parent=5 // pred_region
        %s161 = ssub.s32 %s11, 1
        // Predicated region
        $region13: #{run.1} parent=11 // pred_check
          %p162 = pneg %p58
        $region14: #{run.1} parent=11 // pred_check_branch
          %164 = sbr.rel (%p162) target = $region16
        $region15: #{run.1} parent=11 // pred_region
          _
        $region16: #{run.1} parent=11 // pred_fallthru
          _
        // Predicated region
        $region17: #{run.1} parent=11 // pred_check
          %p165 = pneg %p79
        $region18: #{run.1} parent=11 // pred_check_branch
          %167 = sbr.rel (%p165) target = $region20
        $region19: #{run.1} parent=11 // pred_region
          _
        $region20: #{run.1} parent=11 // pred_fallthru
          _
        // Predicated region
        $region21: #{run.1} parent=11 // pred_check
          %p168 = pneg %p100
        $region22: #{run.1} parent=11 // pred_check_branch
          %170 = sbr.rel (%p168) target = $region24
        $region23: #{run.1} parent=11 // pred_region
          _
        $region24: #{run.1} parent=11 // pred_fallthru
          _
        // Predicated region
        $region25: #{run.1} parent=11 // pred_check
          %p171 = pneg %p121
        $region26: #{run.1} parent=11 // pred_check_branch
          %173 = sbr.rel (%p171) target = $region28
        $region27: #{run.1} parent=11 // pred_region
          _
        $region28: #{run.1} parent=11 // pred_fallthru
          _
      $region12: #{run.1} parent=5 // pred_fallthru
        _
      %p174 = scmp.lt.s32.totalorder %s11, 3
      // Predicated region
      $region29: #{run.1} parent=5 // pred_check
        %p175 = pneg %p174
      $region30: #{run.1} parent=5 // pred_check_branch
        %177 = sbr.rel (%p175) target = $region32
      $region31: #{run.1} parent=5 // pred_region
        // Predicated region
        $region33: #{run.1} parent=31 // pred_check
          %p178 = pneg %p31
        $region34: #{run.1} parent=31 // pred_check_branch
          %180 = sbr.rel (%p178) target = $region36
        $region35: #{run.1} parent=31 // pred_region
          %s181 = smul.u32 4, %s11
          %s182 = ssub.s32 10, %s181
          %p183 = scmp.lt.s32.totalorder %s182, 4
          %s184 = scalar_select %p183, %s182, 4
          %s185 = smul.u32 8, %s184
          %s186 = smul.u32 %s185, 3
          %p187 = scmp.lt.s32.totalorder %s181, 9
          %s188 = scalar_select %p187, %s181, 9
          %s189 = smul.addr %s188, 3
          %s190 = smul.addr %s189, 8
          %s191 = scalar_lea.vmem %s0, %s190
          %s192 = smul.u32 4, %s11
          %s193 = ssub.s32 10, %s192
          %p194 = scmp.lt.s32.totalorder %s193, 4
          %s195 = scalar_select %p194, %s193, 4
          %s196 = smul.u32 8, %s195
          %s197 = smul.u32 %s196, 3
        $region36: #{run.1} parent=31 // pred_fallthru
          _
      $region32: #{run.1} parent=5 // pred_fallthru
        _
      %p198 = scmp.le.s32.totalorder 1, %s11
      %p199 = scmp.lt.s32.totalorder %s11, 4
      %p200 = pnand %p198, %p199
      %p201 = pneg %p200
      // Predicated region
      $region37: #{run.1} parent=5 // pred_check
        _
      $region38: #{run.1} parent=5 // pred_check_branch
        %203 = sbr.rel (%p200) target = $region40
      $region39: #{run.1} parent=5 // pred_region
        %s204 = ssub.s32 %s11, 1
        %s205 = smul.u32 4, %s16
        %s206 = ssub.s32 10, %s205
        %p207 = scmp.lt.s32.totalorder %s206, 4
        %s208 = scalar_select %p207, %s206, 4
        %s209 = smul.u32 8, %s208
        %s210 = smul.u32 %s209, 3
        %p211 = scmp.lt.s32.totalorder %s205, 9
        %s212 = scalar_select %p211, %s205, 9
        %s213 = smul.addr %s212, 3
        %s214 = smul.addr %s213, 8
        %s215 = scalar_lea.vmem %s0, %s214
        %p216 = pneg %p37
        %p217 = pneg %p34
        %p218 = pneg %p58
        %p219 = pneg %p55
        %p220 = pneg %p79
        %p221 = pneg %p76
        %p222 = pneg %p100
        %p223 = pneg %p97
        %p224 = pneg %p121
        %p225 = pneg %p118
        %p226 = pneg %p147
        %p227 = pneg %p144
        %s228 = sand.u32 %s134, 1
        %s229 = sand.u32 %s134, 1
        %s230 = smul.addr %s229, 32
        %s231 = scalar_lea.vmem [#allocation2], %s230
        %s232 = smul.u32 4, %s16
        %s233 = ssub.s32 10, %s232
        %p234 = scmp.lt.s32.totalorder %s233, 4
        %s235 = scalar_select %p234, %s233, 4
        %s236 = smul.u32 8, %s235
        %s237 = smul.u32 %s236, 3
        %p238 = scmp.lt.s32.totalorder %s232, 9
        %s239 = scalar_select %p238, %s232, 9
        %s240 = smul.addr %s239, 3
        %s241 = smul.addr %s240, 8
        %s242 = scalar_lea.vmem %s0, %s241
        %s243 = smul.u32 4, %s16
        %s244 = ssub.s32 10, %s243
        %p245 = scmp.lt.s32.totalorder %s244, 4
        %s246 = scalar_select %p245, %s244, 4
        %s247 = smul.u32 8, %s246
        %s248 = smul.u32 %s247, 3
        %s249 = smul.u32 4, %s16
        %s250 = ssub.s32 10, %s249
        %p251 = scmp.lt.s32.totalorder %s250, 4
        %s252 = scalar_select %p251, %s250, 4
        %s253 = smul.u32 8, %s252
        %v255 = vld [vmem:[%s242] sm:$0xff]
        %v256 = vld [vmem:[%s242 + $0x8] sm:$0xff]
        %v257 = vld [vmem:[%s242 + $0x10] sm:$0xff]
        %v258 = vld [vmem:[%s242 + $0x18] sm:$0xff]
        %v259 = vld [vmem:[%s242 + $0x20] sm:$0xff]
        %v260 = vld [vmem:[%s242 + $0x28] sm:$0xff]
        %v261 = vld [vmem:[%s242 + $0x30] sm:$0xff]
        %v262 = vld [vmem:[%s242 + $0x38] sm:$0xff]
        %v263 = vld [vmem:[%s242 + $0x40] sm:$0xff]
        %v264 = vld [vmem:[%s242 + $0x48] sm:$0xff]
        %v265 = vld [vmem:[%s242 + $0x50] sm:$0xff]
        %v266 = vld [vmem:[%s242 + $0x58] sm:$0xff]
        %v267 = vpack.c.bf16 %v258, %v255
        %v268 = vpack.c.bf16 %v259, %v256
        %v269 = vpack.c.bf16 %v260, %v257
        %v270 = vpack.c.bf16 %v264, %v261
        %v271 = vpack.c.bf16 %v265, %v262
        %v272 = vpack.c.bf16 %v266, %v263
        %v273 = vld [vmem:[%s4] sm:$0x1]
        %v274 = vld [vmem:[%s1] sm:$0xff]
        %v275 = vld [vmem:[%s1 + $0x8] sm:$0xff]
        %v276 = vld [vmem:[%s1 + $0x10] sm:$0xff]
        %v277 = vld [vmem:[%s1 + $0x18] sm:$0xff]
        %v278 = vld [vmem:[%s1 + $0x20] sm:$0xff]
        %v279 = vld [vmem:[%s1 + $0x28] sm:$0xff]
        %v280 = vld [vmem:[%s1 + $0x30] sm:$0xff]
        %v281 = vld [vmem:[%s1 + $0x38] sm:$0xff]
        %v282 = vld [vmem:[%s1 + $0x40] sm:$0xff]
        %v283 = vld [vmem:[%s1 + $0x48] sm:$0xff]
        %v284 = vld [vmem:[%s1 + $0x50] sm:$0xff]
        %v285 = vld [vmem:[%s1 + $0x58] sm:$0xff]
        %v286 = vld [vmem:[%s1 + $0x60] sm:$0xff]
        %v287 = vld [vmem:[%s1 + $0x68] sm:$0xff]
        %v288 = vld [vmem:[%s1 + $0x70] sm:$0xff]
        %v289 = vld [vmem:[%s1 + $0x78] sm:$0xff]
        %v290 = vld [vmem:[%s1 + $0x80] sm:$0xff]
        %v291 = vld [vmem:[%s1 + $0x88] sm:$0xff]
        %v292 = vld [vmem:[%s1 + $0x90] sm:$0xff]
        %v293 = vld [vmem:[%s1 + $0x98] sm:$0xff]
        %v294 = vld [vmem:[%s1 + $0xa0] sm:$0xff]
        %v295 = vld [vmem:[%s1 + $0xa8] sm:$0xff]
        %v296 = vld [vmem:[%s1 + $0xb0] sm:$0xff]
        %v297 = vld [vmem:[%s1 + $0xb8] sm:$0xff]
        %v298 = vld [vmem:[%s1 + $0xc0] sm:$0xff]
        %v299 = vld [vmem:[%s1 + $0xc8] sm:$0xff]
        %v300 = vld [vmem:[%s1 + $0xd0] sm:$0xff]
        %v301 = vld [vmem:[%s1 + $0xd8] sm:$0xff]
        %v302 = vld [vmem:[%s1 + $0xe0] sm:$0xff]
        %v303 = vld [vmem:[%s1 + $0xe8] sm:$0xff]
        %v304 = vld [vmem:[%s1 + $0xf0] sm:$0xff]
        %v305 = vld [vmem:[%s1 + $0xf8] sm:$0xff]
        %v306 = vld [vmem:[%s1 + $0x100] sm:$0xff]
        %v307 = vld [vmem:[%s1 + $0x108] sm:$0xff]
        %v308 = vld [vmem:[%s1 + $0x110] sm:$0xff]
        %v309 = vld [vmem:[%s1 + $0x118] sm:$0xff]
        %v310 = vld [vmem:[%s1 + $0x120] sm:$0xff]
        %v311 = vld [vmem:[%s1 + $0x128] sm:$0xff]
        %v312 = vld [vmem:[%s1 + $0x130] sm:$0xff]
        %v313 = vld [vmem:[%s1 + $0x138] sm:$0xff]
        %v314 = vld [vmem:[%s1 + $0x140] sm:$0xff]
        %v315 = vld [vmem:[%s1 + $0x148] sm:$0xff]
        %v316 = vld [vmem:[%s1 + $0x150] sm:$0xff]
        %v317 = vld [vmem:[%s1 + $0x158] sm:$0xff]
        %v318 = vld [vmem:[%s1 + $0x160] sm:$0xff]
        %v319 = vld [vmem:[%s1 + $0x168] sm:$0xff]
        %v320 = vld [vmem:[%s1 + $0x170] sm:$0xff]
        %v321 = vld [vmem:[%s1 + $0x178] sm:$0xff]
        %v322 = vld [vmem:[%s1 + $0x180] sm:$0xff]
        %v323 = vld [vmem:[%s1 + $0x188] sm:$0xff]
        %v324 = vld [vmem:[%s1 + $0x190] sm:$0xff]
        %v325 = vld [vmem:[%s1 + $0x198] sm:$0xff]
        %v326 = vld [vmem:[%s1 + $0x1a0] sm:$0xff]
        %v327 = vld [vmem:[%s1 + $0x1a8] sm:$0xff]
        %v328 = vld [vmem:[%s1 + $0x1b0] sm:$0xff]
        %v329 = vld [vmem:[%s1 + $0x1b8] sm:$0xff]
        %v330 = vld [vmem:[%s1 + $0x1c0] sm:$0xff]
        %v331 = vld [vmem:[%s1 + $0x1c8] sm:$0xff]
        %v332 = vld [vmem:[%s1 + $0x1d0] sm:$0xff]
        %v333 = vld [vmem:[%s1 + $0x1d8] sm:$0xff]
        %v334 = vld [vmem:[%s1 + $0x1e0] sm:$0xff]
        %v335 = vld [vmem:[%s1 + $0x1e8] sm:$0xff]
        %v336 = vld [vmem:[%s1 + $0x1f0] sm:$0xff]
        %v337 = vld [vmem:[%s1 + $0x1f8] sm:$0xff]
        %v338 = vld [vmem:[%s1 + $0x200] sm:$0xff]
        %v339 = vld [vmem:[%s1 + $0x208] sm:$0xff]
        %v340 = vld [vmem:[%s1 + $0x210] sm:$0xff]
        %v341 = vld [vmem:[%s1 + $0x218] sm:$0xff]
        %v342 = vld [vmem:[%s1 + $0x220] sm:$0xff]
        %v343 = vld [vmem:[%s1 + $0x228] sm:$0xff]
        %v344 = vld [vmem:[%s1 + $0x230] sm:$0xff]
        %v345 = vld [vmem:[%s1 + $0x238] sm:$0xff]
        %v346 = vld [vmem:[%s1 + $0x240] sm:$0xff]
        %v347 = vld [vmem:[%s1 + $0x248] sm:$0xff]
        %v348 = vld [vmem:[%s1 + $0x250] sm:$0xff]
        %v349 = vld [vmem:[%s1 + $0x258] sm:$0xff]
        %v350 = vld [vmem:[%s1 + $0x260] sm:$0xff]
        %v351 = vld [vmem:[%s1 + $0x268] sm:$0xff]
        %v352 = vld [vmem:[%s1 + $0x270] sm:$0xff]
        %v353 = vld [vmem:[%s1 + $0x278] sm:$0xff]
        %v354 = vld [vmem:[%s1 + $0x280] sm:$0xff]
        %v355 = vld [vmem:[%s1 + $0x288] sm:$0xff]
        %v356 = vld [vmem:[%s1 + $0x290] sm:$0xff]
        %v357 = vld [vmem:[%s1 + $0x298] sm:$0xff]
        %v358 = vld [vmem:[%s1 + $0x2a0] sm:$0xff]
        %v359 = vld [vmem:[%s1 + $0x2a8] sm:$0xff]
        %v360 = vld [vmem:[%s1 + $0x2b0] sm:$0x77]
        %v361 = vld [vmem:[%s1 + $0x2b8] sm:$0x77]
        %v362 = vld [vmem:[%s2] sm:$0xf]
        %v364 = vperm.slane %v362, 0
        %v365 = vperm.slane %v362, 1
        %v366 = vperm.slane %v362, 2
        %v367 = vperm.slane %v362, 3
        %v460 = vunpack.c.l.b16 %v274
        %v461 = vunpack.c.h.b16 %v274
        %v462 = vunpack.c.l.b16 %v275
        %v463 = vunpack.c.h.b16 %v275
        %v464 = vunpack.c.l.b16 %v276
        %v465 = vunpack.c.h.b16 %v276
        %v466 = vunpack.c.l.b16 %v277
        %v467 = vunpack.c.h.b16 %v277
        %v468 = vunpack.c.l.b16 %v278
        %v469 = vunpack.c.h.b16 %v278
        %v470 = vunpack.c.l.b16 %v279
        %v471 = vunpack.c.h.b16 %v279
        %v472 = vunpack.c.l.b16 %v280
        %v473 = vunpack.c.h.b16 %v280
        %v474 = vunpack.c.l.b16 %v281
        %v475 = vunpack.c.h.b16 %v281
        %v476 = vunpack.c.l.b16 %v282
        %v477 = vunpack.c.h.b16 %v282
        %v478 = vunpack.c.l.b16 %v283
        %v479 = vunpack.c.h.b16 %v283
        %v480 = vunpack.c.l.b16 %v284
        %v481 = vunpack.c.h.b16 %v284
        %v482 = vunpack.c.l.b16 %v285
        %v483 = vunpack.c.h.b16 %v285
        %v484 = vunpack.c.l.b16 %v286
        %v485 = vunpack.c.h.b16 %v286
        %v486 = vunpack.c.l.b16 %v287
        %v487 = vunpack.c.h.b16 %v287
        %v488 = vunpack.c.l.b16 %v288
        %v489 = vunpack.c.h.b16 %v288
        %v490 = vunpack.c.l.b16 %v289
        %v491 = vunpack.c.h.b16 %v289
        %v492 = vunpack.c.l.b16 %v290
        %v493 = vunpack.c.h.b16 %v290
        %v494 = vunpack.c.l.b16 %v291
        %v495 = vunpack.c.h.b16 %v291
        %v496 = vunpack.c.l.b16 %v292
        %v497 = vunpack.c.h.b16 %v292
        %v498 = vunpack.c.l.b16 %v293
        %v499 = vunpack.c.h.b16 %v293
        %v500 = vunpack.c.l.b16 %v294
        %v501 = vunpack.c.h.b16 %v294
        %v502 = vunpack.c.l.b16 %v295
        %v503 = vunpack.c.h.b16 %v295
        %v504 = vunpack.c.l.b16 %v296
        %v505 = vunpack.c.h.b16 %v296
        %v506 = vunpack.c.l.b16 %v297
        %v507 = vunpack.c.h.b16 %v297
        %v508 = vunpack.c.l.b16 %v298
        %v509 = vunpack.c.h.b16 %v298
        %v510 = vunpack.c.l.b16 %v299
        %v511 = vunpack.c.h.b16 %v299
        %v512 = vunpack.c.l.b16 %v300
        %v513 = vunpack.c.h.b16 %v300
        %v514 = vunpack.c.l.b16 %v301
        %v515 = vunpack.c.h.b16 %v301
        %v516 = vunpack.c.l.b16 %v302
        %v517 = vunpack.c.h.b16 %v302
        %v518 = vunpack.c.l.b16 %v303
        %v519 = vunpack.c.h.b16 %v303
        %v520 = vunpack.c.l.b16 %v304
        %v521 = vunpack.c.h.b16 %v304
        %v522 = vunpack.c.l.b16 %v305
        %v523 = vunpack.c.h.b16 %v305
        %v524 = vunpack.c.l.b16 %v306
        %v525 = vunpack.c.h.b16 %v306
        %v526 = vunpack.c.l.b16 %v307
        %v527 = vunpack.c.h.b16 %v307
        %v528 = vunpack.c.l.b16 %v308
        %v529 = vunpack.c.h.b16 %v308
        %v530 = vunpack.c.l.b16 %v309
        %v531 = vunpack.c.h.b16 %v309
        %v532 = vunpack.c.l.b16 %v310
        %v533 = vunpack.c.h.b16 %v310
        %v534 = vunpack.c.l.b16 %v311
        %v535 = vunpack.c.h.b16 %v311
        %v536 = vunpack.c.l.b16 %v312
        %v537 = vunpack.c.h.b16 %v312
        %v538 = vunpack.c.l.b16 %v313
        %v539 = vunpack.c.h.b16 %v313
        %v540 = vunpack.c.l.b16 %v314
        %v541 = vunpack.c.h.b16 %v314
        %v542 = vunpack.c.l.b16 %v315
        %v543 = vunpack.c.h.b16 %v315
        %v544 = vunpack.c.l.b16 %v316
        %v545 = vunpack.c.h.b16 %v316
        %v546 = vunpack.c.l.b16 %v317
        %v547 = vunpack.c.h.b16 %v317
        %v548 = vunpack.c.l.b16 %v318
        %v549 = vunpack.c.h.b16 %v318
        %v550 = vunpack.c.l.b16 %v319
        %v551 = vunpack.c.h.b16 %v319
        %v552 = vunpack.c.l.b16 %v320
        %v553 = vunpack.c.h.b16 %v320
        %v554 = vunpack.c.l.b16 %v321
        %v555 = vunpack.c.h.b16 %v321
        %v556 = vunpack.c.l.b16 %v322
        %v557 = vunpack.c.h.b16 %v322
        %v558 = vunpack.c.l.b16 %v323
        %v559 = vunpack.c.h.b16 %v323
        %v560 = vunpack.c.l.b16 %v324
        %v561 = vunpack.c.h.b16 %v324
        %v562 = vunpack.c.l.b16 %v325
        %v563 = vunpack.c.h.b16 %v325
        %v564 = vunpack.c.l.b16 %v326
        %v565 = vunpack.c.h.b16 %v326
        %v566 = vunpack.c.l.b16 %v327
        %v567 = vunpack.c.h.b16 %v327
        %v568 = vunpack.c.l.b16 %v328
        %v569 = vunpack.c.h.b16 %v328
        %v570 = vunpack.c.l.b16 %v329
        %v571 = vunpack.c.h.b16 %v329
        %v572 = vunpack.c.l.b16 %v330
        %v573 = vunpack.c.h.b16 %v330
        %v574 = vunpack.c.l.b16 %v331
        %v575 = vunpack.c.h.b16 %v331
        %v576 = vunpack.c.l.b16 %v332
        %v577 = vunpack.c.h.b16 %v332
        %v578 = vunpack.c.l.b16 %v333
        %v579 = vunpack.c.h.b16 %v333
        %v580 = vunpack.c.l.b16 %v334
        %v581 = vunpack.c.h.b16 %v334
        %v582 = vunpack.c.l.b16 %v335
        %v583 = vunpack.c.h.b16 %v335
        %v584 = vunpack.c.l.b16 %v336
        %v585 = vunpack.c.h.b16 %v336
        %v586 = vunpack.c.l.b16 %v337
        %v587 = vunpack.c.h.b16 %v337
        %v588 = vunpack.c.l.b16 %v338
        %v589 = vunpack.c.h.b16 %v338
        %v590 = vunpack.c.l.b16 %v339
        %v591 = vunpack.c.h.b16 %v339
        %v592 = vunpack.c.l.b16 %v340
        %v593 = vunpack.c.h.b16 %v340
        %v594 = vunpack.c.l.b16 %v341
        %v595 = vunpack.c.h.b16 %v341
        %v596 = vunpack.c.l.b16 %v342
        %v597 = vunpack.c.h.b16 %v342
        %v598 = vunpack.c.l.b16 %v343
        %v599 = vunpack.c.h.b16 %v343
        %v600 = vunpack.c.l.b16 %v344
        %v601 = vunpack.c.h.b16 %v344
        %v602 = vunpack.c.l.b16 %v345
        %v603 = vunpack.c.h.b16 %v345
        %v604 = vunpack.c.l.b16 %v346
        %v605 = vunpack.c.h.b16 %v346
        %v606 = vunpack.c.l.b16 %v347
        %v607 = vunpack.c.h.b16 %v347
        %v608 = vunpack.c.l.b16 %v348
        %v609 = vunpack.c.h.b16 %v348
        %v610 = vunpack.c.l.b16 %v349
        %v611 = vunpack.c.h.b16 %v349
        %v612 = vunpack.c.l.b16 %v350
        %v613 = vunpack.c.h.b16 %v350
        %v614 = vunpack.c.l.b16 %v351
        %v615 = vunpack.c.h.b16 %v351
        %v616 = vunpack.c.l.b16 %v352
        %v617 = vunpack.c.h.b16 %v352
        %v618 = vunpack.c.l.b16 %v353
        %v619 = vunpack.c.h.b16 %v353
        %v620 = vunpack.c.l.b16 %v354
        %v621 = vunpack.c.h.b16 %v354
        %v622 = vunpack.c.l.b16 %v355
        %v623 = vunpack.c.h.b16 %v355
        %v624 = vunpack.c.l.b16 %v356
        %v625 = vunpack.c.h.b16 %v356
        %v626 = vunpack.c.l.b16 %v357
        %v627 = vunpack.c.h.b16 %v357
        %v628 = vunpack.c.l.b16 %v358
        %v629 = vunpack.c.h.b16 %v358
        %v630 = vunpack.c.l.b16 %v359
        %v631 = vunpack.c.h.b16 %v359
        %v632 = vunpack.c.l.b16 %v360
        %v633 = vunpack.c.h.b16 %v360
        %v634 = vunpack.c.l.b16 %v361
        %v635 = vunpack.c.h.b16 %v361
        %v636 = vpack.c.b16 %v464, %v460
        %v637 = vpack.c.b16 %v465, %v461
        %v638 = vpack.c.b16 %v466, %v462
        %v639 = vpack.c.b16 %v467, %v463
        %v640 = vpack.c.b16 %v472, %v468
        %v641 = vpack.c.b16 %v473, %v469
        %v642 = vpack.c.b16 %v474, %v470
        %v643 = vpack.c.b16 %v475, %v471
        %v644 = vpack.c.b16 %v480, %v476
        %v645 = vpack.c.b16 %v481, %v477
        %v646 = vpack.c.b16 %v482, %v478
        %v647 = vpack.c.b16 %v483, %v479
        %v648 = vpack.c.b16 %v488, %v484
        %v649 = vpack.c.b16 %v489, %v485
        %v650 = vpack.c.b16 %v490, %v486
        %v651 = vpack.c.b16 %v491, %v487
        %v652 = vpack.c.b16 %v496, %v492
        %v653 = vpack.c.b16 %v497, %v493
        %v654 = vpack.c.b16 %v498, %v494
        %v655 = vpack.c.b16 %v499, %v495
        %v656 = vpack.c.b16 %v504, %v500
        %v657 = vpack.c.b16 %v505, %v501
        %v658 = vpack.c.b16 %v506, %v502
        %v659 = vpack.c.b16 %v507, %v503
        %v660 = vpack.c.b16 %v512, %v508
        %v661 = vpack.c.b16 %v513, %v509
        %v662 = vpack.c.b16 %v514, %v510
        %v663 = vpack.c.b16 %v515, %v511
        %v664 = vpack.c.b16 %v520, %v516
        %v665 = vpack.c.b16 %v521, %v517
        %v666 = vpack.c.b16 %v522, %v518
        %v667 = vpack.c.b16 %v523, %v519
        %v668 = vpack.c.b16 %v528, %v524
        %v669 = vpack.c.b16 %v529, %v525
        %v670 = vpack.c.b16 %v530, %v526
        %v671 = vpack.c.b16 %v531, %v527
        %v672 = vpack.c.b16 %v536, %v532
        %v673 = vpack.c.b16 %v537, %v533
        %v674 = vpack.c.b16 %v538, %v534
        %v675 = vpack.c.b16 %v539, %v535
        %v676 = vpack.c.b16 %v544, %v540
        %v677 = vpack.c.b16 %v545, %v541
        %v678 = vpack.c.b16 %v546, %v542
        %v679 = vpack.c.b16 %v547, %v543
        %v680 = vpack.c.b16 %v552, %v548
        %v681 = vpack.c.b16 %v553, %v549
        %v682 = vpack.c.b16 %v554, %v550
        %v683 = vpack.c.b16 %v555, %v551
        %v684 = vpack.c.b16 %v560, %v556
        %v685 = vpack.c.b16 %v561, %v557
        %v686 = vpack.c.b16 %v562, %v558
        %v687 = vpack.c.b16 %v563, %v559
        %v688 = vpack.c.b16 %v568, %v564
        %v689 = vpack.c.b16 %v569, %v565
        %v690 = vpack.c.b16 %v570, %v566
        %v691 = vpack.c.b16 %v571, %v567
        %v692 = vpack.c.b16 %v576, %v572
        %v693 = vpack.c.b16 %v577, %v573
        %v694 = vpack.c.b16 %v578, %v574
        %v695 = vpack.c.b16 %v579, %v575
        %v696 = vpack.c.b16 %v584, %v580
        %v697 = vpack.c.b16 %v585, %v581
        %v698 = vpack.c.b16 %v586, %v582
        %v699 = vpack.c.b16 %v587, %v583
        %v700 = vpack.c.b16 %v592, %v588
        %v701 = vpack.c.b16 %v593, %v589
        %v702 = vpack.c.b16 %v594, %v590
        %v703 = vpack.c.b16 %v595, %v591
        %v704 = vpack.c.b16 %v600, %v596
        %v705 = vpack.c.b16 %v601, %v597
        %v706 = vpack.c.b16 %v602, %v598
        %v707 = vpack.c.b16 %v603, %v599
        %v708 = vpack.c.b16 %v608, %v604
        %v709 = vpack.c.b16 %v609, %v605
        %v710 = vpack.c.b16 %v610, %v606
        %v711 = vpack.c.b16 %v611, %v607
        %v712 = vpack.c.b16 %v616, %v612
        %v713 = vpack.c.b16 %v617, %v613
        %v714 = vpack.c.b16 %v618, %v614
        %v715 = vpack.c.b16 %v619, %v615
        %v716 = vpack.c.b16 %v624, %v620
        %v717 = vpack.c.b16 %v625, %v621
        %v718 = vpack.c.b16 %v626, %v622
        %v719 = vpack.c.b16 %v627, %v623
        %v720 = vpack.c.b16 %v632, %v628
        %v721 = vpack.c.b16 %v633, %v629
        %v722 = vpack.c.b16 %v634, %v630
        %v723 = vpack.c.b16 %v635, %v631
        %vm808 = vcmask 760832
        %v810 = vsel %vm808, %v269, 0
        %v813 = vsel %vm808, %v272, 0
        %vm815 = vcmask 1045504
        %vm816 = vcmask 1046528
        %v817 = vsel %vm815, 4294967295, 65535
        %v818 = vsel %vm816, %v817, 0
        %v820 = vand.u32 %v720, %v818
        %v823 = vand.u32 %v721, %v818
        %v826 = vand.u32 %v722, %v818
        %v829 = vand.u32 %v723, %v818
        %831 = vmatpush.bf16.msra.mxu0 %v664
        %832 = vmatpush.bf16.msra.mxu0 %v660
        %833 = vmatpush.bf16.msra.mxu0 %v656
        %834 = vmatpush.bf16.msra.mxu0 %v652
        %835 = vmatpush.bf16.msra.mxu0 %v648
        %836 = vmatpush.bf16.msra.mxu0 %v644
        %837 = vmatpush.bf16.msra.mxu0 %v640
        %838 = vmatpush.bf16.msra.mxu0 %v636
        %839 = vmatmul.bf16.gmra.mxu0 %v267
        %v840 = vpop.f32.mrf.mxu0
        %v841 = vadd.f32 %v364, %v840
        %v842 = vpop.f32.mrf.mxu0
        %v843 = vadd.f32 %v364, %v842
        %844 = vmatmul.bf16.gmra.mxu0 %v270
        %v845 = vpop.f32.mrf.mxu0
        %v846 = vadd.f32 %v364, %v845
        %v847 = vpop.f32.mrf.mxu0
        %v848 = vadd.f32 %v364, %v847
        %849 = vdwg.mxu0
        %850 = vmatpush.bf16.msra.mxu0 %v696
        %851 = vmatpush.bf16.msra.mxu0 %v692
        %852 = vmatpush.bf16.msra.mxu0 %v688
        %853 = vmatpush.bf16.msra.mxu0 %v684
        %854 = vmatpush.bf16.msra.mxu0 %v680
        %855 = vmatpush.bf16.msra.mxu0 %v676
        %856 = vmatpush.bf16.msra.mxu0 %v672
        %857 = vmatpush.bf16.msra.mxu0 %v668
        %858 = vmatmul.bf16.gmra.mxu0 %v268
        %v859 = vpop.f32.mrf.mxu0
        %v860 = vadd.f32 %v841, %v859
        %v861 = vpop.f32.mrf.mxu0
        %v862 = vadd.f32 %v843, %v861
        %863 = vmatmul.bf16.gmra.mxu0 %v271
        %v864 = vpop.f32.mrf.mxu0
        %v865 = vadd.f32 %v846, %v864
        %v866 = vpop.f32.mrf.mxu0
        %v867 = vadd.f32 %v848, %v866
        %868 = vdwg.mxu0
        %869 = vmatpush.bf16.msra.mxu0 0
        %870 = vmatpush.bf16.msra.mxu0 0
        %871 = vmatpush.bf16.msra.mxu0 %v820
        %872 = vmatpush.bf16.msra.mxu0 %v716
        %873 = vmatpush.bf16.msra.mxu0 %v712
        %874 = vmatpush.bf16.msra.mxu0 %v708
        %875 = vmatpush.bf16.msra.mxu0 %v704
        %876 = vmatpush.bf16.msra.mxu0 %v700
        %877 = vmatmul.bf16.gmra.mxu0 %v810
        %v878 = vpop.f32.mrf.mxu0
        %v879 = vadd.f32 %v860, %v878
        %v880 = vpop.f32.mrf.mxu0
        %v881 = vadd.f32 %v862, %v880
        %882 = vmatmul.bf16.gmra.mxu0 %v813
        %v883 = vpop.f32.mrf.mxu0
        %v884 = vadd.f32 %v865, %v883
        %v885 = vpop.f32.mrf.mxu0
        %v886 = vadd.f32 %v867, %v885
        %887 = vdwg.mxu0
        %888 = vmatpush.bf16.msra.mxu0 %v665
        %889 = vmatpush.bf16.msra.mxu0 %v661
        %890 = vmatpush.bf16.msra.mxu0 %v657
        %891 = vmatpush.bf16.msra.mxu0 %v653
        %892 = vmatpush.bf16.msra.mxu0 %v649
        %893 = vmatpush.bf16.msra.mxu0 %v645
        %894 = vmatpush.bf16.msra.mxu0 %v641
        %895 = vmatpush.bf16.msra.mxu0 %v637
        %896 = vmatmul.bf16.gmra.mxu0 %v267
        %v897 = vpop.f32.mrf.mxu0
        %v898 = vadd.f32 %v365, %v897
        %v899 = vpop.f32.mrf.mxu0
        %v900 = vadd.f32 %v365, %v899
        %901 = vmatmul.bf16.gmra.mxu0 %v270
        %v902 = vpop.f32.mrf.mxu0
        %v903 = vadd.f32 %v365, %v902
        %v904 = vpop.f32.mrf.mxu0
        %v905 = vadd.f32 %v365, %v904
        %906 = vdwg.mxu0
        %907 = vmatpush.bf16.msra.mxu0 %v697
        %908 = vmatpush.bf16.msra.mxu0 %v693
        %909 = vmatpush.bf16.msra.mxu0 %v689
        %910 = vmatpush.bf16.msra.mxu0 %v685
        %911 = vmatpush.bf16.msra.mxu0 %v681
        %912 = vmatpush.bf16.msra.mxu0 %v677
        %913 = vmatpush.bf16.msra.mxu0 %v673
        %914 = vmatpush.bf16.msra.mxu0 %v669
        %915 = vmatmul.bf16.gmra.mxu0 %v268
        %v916 = vpop.f32.mrf.mxu0
        %v917 = vadd.f32 %v898, %v916
        %v918 = vpop.f32.mrf.mxu0
        %v919 = vadd.f32 %v900, %v918
        %920 = vmatmul.bf16.gmra.mxu0 %v271
        %v921 = vpop.f32.mrf.mxu0
        %v922 = vadd.f32 %v903, %v921
        %v923 = vpop.f32.mrf.mxu0
        %v924 = vadd.f32 %v905, %v923
        %925 = vdwg.mxu0
        %926 = vmatpush.bf16.msra.mxu0 0
        %927 = vmatpush.bf16.msra.mxu0 0
        %928 = vmatpush.bf16.msra.mxu0 %v823
        %929 = vmatpush.bf16.msra.mxu0 %v717
        %930 = vmatpush.bf16.msra.mxu0 %v713
        %931 = vmatpush.bf16.msra.mxu0 %v709
        %932 = vmatpush.bf16.msra.mxu0 %v705
        %933 = vmatpush.bf16.msra.mxu0 %v701
        %934 = vmatmul.bf16.gmra.mxu0 %v810
        %v935 = vpop.f32.mrf.mxu0
        %v936 = vadd.f32 %v917, %v935
        %v937 = vpop.f32.mrf.mxu0
        %v938 = vadd.f32 %v919, %v937
        %939 = vmatmul.bf16.gmra.mxu0 %v813
        %v940 = vpop.f32.mrf.mxu0
        %v941 = vadd.f32 %v922, %v940
        %v942 = vpop.f32.mrf.mxu0
        %v943 = vadd.f32 %v924, %v942
        %944 = vdwg.mxu0
        %945 = vmatpush.bf16.msra.mxu0 %v666
        %946 = vmatpush.bf16.msra.mxu0 %v662
        %947 = vmatpush.bf16.msra.mxu0 %v658
        %948 = vmatpush.bf16.msra.mxu0 %v654
        %949 = vmatpush.bf16.msra.mxu0 %v650
        %950 = vmatpush.bf16.msra.mxu0 %v646
        %951 = vmatpush.bf16.msra.mxu0 %v642
        %952 = vmatpush.bf16.msra.mxu0 %v638
        %953 = vmatmul.bf16.gmra.mxu0 %v267
        %v954 = vpop.f32.mrf.mxu0
        %v955 = vadd.f32 %v366, %v954
        %v956 = vpop.f32.mrf.mxu0
        %v957 = vadd.f32 %v366, %v956
        %958 = vmatmul.bf16.gmra.mxu0 %v270
        %v959 = vpop.f32.mrf.mxu0
        %v960 = vadd.f32 %v366, %v959
        %v961 = vpop.f32.mrf.mxu0
        %v962 = vadd.f32 %v366, %v961
        %963 = vdwg.mxu0
        %964 = vmatpush.bf16.msra.mxu0 %v698
        %965 = vmatpush.bf16.msra.mxu0 %v694
        %966 = vmatpush.bf16.msra.mxu0 %v690
        %967 = vmatpush.bf16.msra.mxu0 %v686
        %968 = vmatpush.bf16.msra.mxu0 %v682
        %969 = vmatpush.bf16.msra.mxu0 %v678
        %970 = vmatpush.bf16.msra.mxu0 %v674
        %971 = vmatpush.bf16.msra.mxu0 %v670
        %972 = vmatmul.bf16.gmra.mxu0 %v268
        %v973 = vpop.f32.mrf.mxu0
        %v974 = vadd.f32 %v955, %v973
        %v975 = vpop.f32.mrf.mxu0
        %v976 = vadd.f32 %v957, %v975
        %977 = vmatmul.bf16.gmra.mxu0 %v271
        %v978 = vpop.f32.mrf.mxu0
        %v979 = vadd.f32 %v960, %v978
        %v980 = vpop.f32.mrf.mxu0
        %v981 = vadd.f32 %v962, %v980
        %982 = vdwg.mxu0
        %983 = vmatpush.bf16.msra.mxu0 0
        %984 = vmatpush.bf16.msra.mxu0 0
        %985 = vmatpush.bf16.msra.mxu0 %v826
        %986 = vmatpush.bf16.msra.mxu0 %v718
        %987 = vmatpush.bf16.msra.mxu0 %v714
        %988 = vmatpush.bf16.msra.mxu0 %v710
        %989 = vmatpush.bf16.msra.mxu0 %v706
        %990 = vmatpush.bf16.msra.mxu0 %v702
        %991 = vmatmul.bf16.gmra.mxu0 %v810
        %v992 = vpop.f32.mrf.mxu0
        %v993 = vadd.f32 %v974, %v992
        %v994 = vpop.f32.mrf.mxu0
        %v995 = vadd.f32 %v976, %v994
        %996 = vmatmul.bf16.gmra.mxu0 %v813
        %v997 = vpop.f32.mrf.mxu0
        %v998 = vadd.f32 %v979, %v997
        %v999 = vpop.f32.mrf.mxu0
        %v1000 = vadd.f32 %v981, %v999
        %1001 = vdwg.mxu0
        %1002 = vmatpush.bf16.msra.mxu0 %v667
        %1003 = vmatpush.bf16.msra.mxu0 %v663
        %1004 = vmatpush.bf16.msra.mxu0 %v659
        %1005 = vmatpush.bf16.msra.mxu0 %v655
        %1006 = vmatpush.bf16.msra.mxu0 %v651
        %1007 = vmatpush.bf16.msra.mxu0 %v647
        %1008 = vmatpush.bf16.msra.mxu0 %v643
        %1009 = vmatpush.bf16.msra.mxu0 %v639
        %1010 = vmatmul.bf16.gmra.mxu0 %v267
        %v1011 = vpop.f32.mrf.mxu0
        %v1012 = vadd.f32 %v367, %v1011
        %v1013 = vpop.f32.mrf.mxu0
        %v1014 = vadd.f32 %v367, %v1013
        %1015 = vmatmul.bf16.gmra.mxu0 %v270
        %v1016 = vpop.f32.mrf.mxu0
        %v1017 = vadd.f32 %v367, %v1016
        %v1018 = vpop.f32.mrf.mxu0
        %v1019 = vadd.f32 %v367, %v1018
        %1020 = vdwg.mxu0
        %1021 = vmatpush.bf16.msra.mxu0 %v699
        %1022 = vmatpush.bf16.msra.mxu0 %v695
        %1023 = vmatpush.bf16.msra.mxu0 %v691
        %1024 = vmatpush.bf16.msra.mxu0 %v687
        %1025 = vmatpush.bf16.msra.mxu0 %v683
        %1026 = vmatpush.bf16.msra.mxu0 %v679
        %1027 = vmatpush.bf16.msra.mxu0 %v675
        %1028 = vmatpush.bf16.msra.mxu0 %v671
        %1029 = vmatmul.bf16.gmra.mxu0 %v268
        %v1030 = vpop.f32.mrf.mxu0
        %v1031 = vadd.f32 %v1012, %v1030
        %v1032 = vpop.f32.mrf.mxu0
        %v1033 = vadd.f32 %v1014, %v1032
        %1034 = vmatmul.bf16.gmra.mxu0 %v271
        %v1035 = vpop.f32.mrf.mxu0
        %v1036 = vadd.f32 %v1017, %v1035
        %v1037 = vpop.f32.mrf.mxu0
        %v1038 = vadd.f32 %v1019, %v1037
        %1039 = vdwg.mxu0
        %1040 = vmatpush.bf16.msra.mxu0 0
        %1041 = vmatpush.bf16.msra.mxu0 0
        %1042 = vmatpush.bf16.msra.mxu0 %v829
        %1043 = vmatpush.bf16.msra.mxu0 %v719
        %1044 = vmatpush.bf16.msra.mxu0 %v715
        %1045 = vmatpush.bf16.msra.mxu0 %v711
        %1046 = vmatpush.bf16.msra.mxu0 %v707
        %1047 = vmatpush.bf16.msra.mxu0 %v703
        %1048 = vmatmul.bf16.gmra.mxu0 %v810
        %v1049 = vpop.f32.mrf.mxu0
        %v1050 = vadd.f32 %v1031, %v1049
        %v1051 = vpop.f32.mrf.mxu0
        %v1052 = vadd.f32 %v1033, %v1051
        %1053 = vmatmul.bf16.gmra.mxu0 %v813
        %v1054 = vpop.f32.mrf.mxu0
        %v1055 = vadd.f32 %v1036, %v1054
        %v1056 = vpop.f32.mrf.mxu0
        %v1057 = vadd.f32 %v1038, %v1056
        %1058 = vdwg.mxu0
        %v1059 = vmax.f32 %v879, 0.0
        %v1060 = vmax.f32 %v936, 0.0
        %v1061 = vmax.f32 %v993, 0.0
        %v1062 = vmax.f32 %v1050, 0.0
        %v1063 = vmax.f32 %v881, 0.0
        %v1064 = vmax.f32 %v938, 0.0
        %v1065 = vmax.f32 %v995, 0.0
        %v1066 = vmax.f32 %v1052, 0.0
        %v1067 = vmax.f32 %v884, 0.0
        %v1068 = vmax.f32 %v941, 0.0
        %v1069 = vmax.f32 %v998, 0.0
        %v1070 = vmax.f32 %v1055, 0.0
        %v1071 = vmax.f32 %v886, 0.0
        %v1072 = vmax.f32 %v943, 0.0
        %v1073 = vmax.f32 %v1000, 0.0
        %v1074 = vmax.f32 %v1057, 0.0
        %v1075 = vpack.c.bf16 %v1063, %v1059
        %v1076 = vpack.c.bf16 %v1064, %v1060
        %v1077 = vpack.c.bf16 %v1065, %v1061
        %v1078 = vpack.c.bf16 %v1066, %v1062
        %v1079 = vpack.c.bf16 %v1071, %v1067
        %v1080 = vpack.c.bf16 %v1072, %v1068
        %v1081 = vpack.c.bf16 %v1073, %v1069
        %v1082 = vpack.c.bf16 %v1074, %v1070
        %v1083 = vld [vmem:[%s3] sm:$0xf]
        %v1084 = vld [vmem:[%s3 + $0x4] sm:$0xf]
        %v1085 = vld [vmem:[%s3 + $0x8] sm:$0xf]
        %v1086 = vld [vmem:[%s3 + $0xc] sm:$0xf]
        %v1087 = vld [vmem:[%s3 + $0x10] sm:$0xf]
        %v1088 = vld [vmem:[%s3 + $0x14] sm:$0xf]
        %v1089 = vld [vmem:[%s3 + $0x18] sm:$0xf]
        %v1090 = vld [vmem:[%s3 + $0x1c] sm:$0xf]
        %v1091 = vld [vmem:[%s3 + $0x20] sm:$0xf]
        %v1092 = vld [vmem:[%s3 + $0x24] sm:$0xf]
        %v1093 = vld [vmem:[%s3 + $0x28] sm:$0xf]
        %v1094 = vld [vmem:[%s3 + $0x2c] sm:$0xf]
        %v1095 = vld [vmem:[%s3 + $0x30] sm:$0xf]
        %v1096 = vld [vmem:[%s3 + $0x34] sm:$0xf]
        %v1097 = vld [vmem:[%s3 + $0x38] sm:$0xf]
        %v1098 = vld [vmem:[%s3 + $0x3c] sm:$0xf]
        %v1099 = vld [vmem:[%s3 + $0x40] sm:$0xf]
        %v1100 = vld [vmem:[%s3 + $0x44] sm:$0xf]
        %v1101 = vld [vmem:[%s3 + $0x48] sm:$0xf]
        %v1102 = vld [vmem:[%s3 + $0x4c] sm:$0xf]
        %v1103 = vld [vmem:[%s3 + $0x50] sm:$0xf]
        %v1104 = vld [vmem:[%s3 + $0x54] sm:$0xf]
        %v1105 = vld [vmem:[%s3 + $0x58] sm:$0xf]
        %v1106 = vld [vmem:[%s3 + $0x5c] sm:$0xf]
        %v1107 = vld [vmem:[%s3 + $0x60] sm:$0xf]
        %v1108 = vld [vmem:[%s3 + $0x64] sm:$0xf]
        %v1109 = vld [vmem:[%s3 + $0x68] sm:$0xf]
        %v1110 = vld [vmem:[%s3 + $0x6c] sm:$0xf]
        %v1111 = vld [vmem:[%s3 + $0x70] sm:$0xf]
        %v1112 = vld [vmem:[%s3 + $0x74] sm:$0xf]
        %v1113 = vld [vmem:[%s3 + $0x78] sm:$0xf]
        %v1114 = vld [vmem:[%s3 + $0x7c] sm:$0xf]
        %v1115 = vld [vmem:[%s3 + $0x80] sm:$0xf]
        %v1116 = vld [vmem:[%s3 + $0x84] sm:$0xf]
        %v1117 = vld [vmem:[%s3 + $0x88] sm:$0xf]
        %v1118 = vld [vmem:[%s3 + $0x8c] sm:$0xf]
        %v1119 = vld [vmem:[%s3 + $0x90] sm:$0xf]
        %v1120 = vld [vmem:[%s3 + $0x94] sm:$0xf]
        %v1121 = vld [vmem:[%s3 + $0x98] sm:$0xf]
        %v1122 = vld [vmem:[%s3 + $0x9c] sm:$0xf]
        %v1123 = vld [vmem:[%s3 + $0xa0] sm:$0xf]
        %v1124 = vld [vmem:[%s3 + $0xa4] sm:$0xf]
        %v1125 = vld [vmem:[%s3 + $0xa8] sm:$0xf]
        %v1126 = vld [vmem:[%s3 + $0xac] sm:$0xf]
        %v1127 = vld [vmem:[%s3 + $0xb0] sm:$0xf]
        %v1128 = vld [vmem:[%s3 + $0xb4] sm:$0xf]
        %v1129 = vld [vmem:[%s3 + $0xb8] sm:$0xf]
        %v1130 = vld [vmem:[%s3 + $0xbc] sm:$0xf]
        %v1131 = vld [vmem:[%s3 + $0xc0] sm:$0xf]
        %v1132 = vld [vmem:[%s3 + $0xc4] sm:$0xf]
        %v1133 = vld [vmem:[%s3 + $0xc8] sm:$0xf]
        %v1134 = vld [vmem:[%s3 + $0xcc] sm:$0xf]
        %v1135 = vld [vmem:[%s3 + $0xd0] sm:$0xf]
        %v1136 = vld [vmem:[%s3 + $0xd4] sm:$0xf]
        %v1137 = vld [vmem:[%s3 + $0xd8] sm:$0xf]
        %v1138 = vld [vmem:[%s3 + $0xdc] sm:$0xf]
        %v1139 = vld [vmem:[%s3 + $0xe0] sm:$0xf]
        %v1140 = vld [vmem:[%s3 + $0xe4] sm:$0xf]
        %v1141 = vld [vmem:[%s3 + $0xe8] sm:$0xf]
        %v1142 = vld [vmem:[%s3 + $0xec] sm:$0xf]
        %v1143 = vld [vmem:[%s3 + $0xf0] sm:$0xf]
        %v1144 = vld [vmem:[%s3 + $0xf4] sm:$0xf]
        %v1145 = vld [vmem:[%s3 + $0xf8] sm:$0xf]
        %v1146 = vld [vmem:[%s3 + $0xfc] sm:$0xf]
        %v1148 = vperm.slane %v273, 0
        %v1214 = vunpack.c.l.b16 %v1083
        %v1215 = vunpack.c.l.b16 %v1084
        %v1216 = vunpack.c.l.b16 %v1085
        %v1217 = vunpack.c.l.b16 %v1086
        %v1218 = vunpack.c.l.b16 %v1087
        %v1219 = vunpack.c.l.b16 %v1088
        %v1220 = vunpack.c.l.b16 %v1089
        %v1221 = vunpack.c.l.b16 %v1090
        %v1222 = vunpack.c.l.b16 %v1091
        %v1223 = vunpack.c.l.b16 %v1092
        %v1224 = vunpack.c.l.b16 %v1093
        %v1225 = vunpack.c.l.b16 %v1094
        %v1226 = vunpack.c.l.b16 %v1095
        %v1227 = vunpack.c.l.b16 %v1096
        %v1228 = vunpack.c.l.b16 %v1097
        %v1229 = vunpack.c.l.b16 %v1098
        %v1230 = vunpack.c.l.b16 %v1099
        %v1231 = vunpack.c.l.b16 %v1100
        %v1232 = vunpack.c.l.b16 %v1101
        %v1233 = vunpack.c.l.b16 %v1102
        %v1234 = vunpack.c.l.b16 %v1103
        %v1235 = vunpack.c.l.b16 %v1104
        %v1236 = vunpack.c.l.b16 %v1105
        %v1237 = vunpack.c.l.b16 %v1106
        %v1238 = vunpack.c.l.b16 %v1107
        %v1239 = vunpack.c.l.b16 %v1108
        %v1240 = vunpack.c.l.b16 %v1109
        %v1241 = vunpack.c.l.b16 %v1110
        %v1242 = vunpack.c.l.b16 %v1111
        %v1243 = vunpack.c.l.b16 %v1112
        %v1244 = vunpack.c.l.b16 %v1113
        %v1245 = vunpack.c.l.b16 %v1114
        %v1246 = vunpack.c.l.b16 %v1115
        %v1247 = vunpack.c.l.b16 %v1116
        %v1248 = vunpack.c.l.b16 %v1117
        %v1249 = vunpack.c.l.b16 %v1118
        %v1250 = vunpack.c.l.b16 %v1119
        %v1251 = vunpack.c.l.b16 %v1120
        %v1252 = vunpack.c.l.b16 %v1121
        %v1253 = vunpack.c.l.b16 %v1122
        %v1254 = vunpack.c.l.b16 %v1123
        %v1255 = vunpack.c.l.b16 %v1124
        %v1256 = vunpack.c.l.b16 %v1125
        %v1257 = vunpack.c.l.b16 %v1126
        %v1258 = vunpack.c.l.b16 %v1127
        %v1259 = vunpack.c.l.b16 %v1128
        %v1260 = vunpack.c.l.b16 %v1129
        %v1261 = vunpack.c.l.b16 %v1130
        %v1262 = vunpack.c.l.b16 %v1131
        %v1263 = vunpack.c.l.b16 %v1132
        %v1264 = vunpack.c.l.b16 %v1133
        %v1265 = vunpack.c.l.b16 %v1134
        %v1266 = vunpack.c.l.b16 %v1135
        %v1267 = vunpack.c.l.b16 %v1136
        %v1268 = vunpack.c.l.b16 %v1137
        %v1269 = vunpack.c.l.b16 %v1138
        %v1270 = vunpack.c.l.b16 %v1139
        %v1271 = vunpack.c.l.b16 %v1140
        %v1272 = vunpack.c.l.b16 %v1141
        %v1273 = vunpack.c.l.b16 %v1142
        %v1274 = vunpack.c.l.b16 %v1143
        %v1275 = vunpack.c.l.b16 %v1144
        %v1276 = vunpack.c.l.b16 %v1145
        %v1277 = vunpack.c.l.b16 %v1146
        %v1278 = vpack.c.b16 %v1215, %v1214
        %v1279 = vpack.c.b16 %v1217, %v1216
        %v1280 = vpack.c.b16 %v1219, %v1218
        %v1281 = vpack.c.b16 %v1221, %v1220
        %v1282 = vpack.c.b16 %v1223, %v1222
        %v1283 = vpack.c.b16 %v1225, %v1224
        %v1284 = vpack.c.b16 %v1227, %v1226
        %v1285 = vpack.c.b16 %v1229, %v1228
        %v1286 = vpack.c.b16 %v1231, %v1230
        %v1287 = vpack.c.b16 %v1233, %v1232
        %v1288 = vpack.c.b16 %v1235, %v1234
        %v1289 = vpack.c.b16 %v1237, %v1236
        %v1290 = vpack.c.b16 %v1239, %v1238
        %v1291 = vpack.c.b16 %v1241, %v1240
        %v1292 = vpack.c.b16 %v1243, %v1242
        %v1293 = vpack.c.b16 %v1245, %v1244
        %v1294 = vpack.c.b16 %v1247, %v1246
        %v1295 = vpack.c.b16 %v1249, %v1248
        %v1296 = vpack.c.b16 %v1251, %v1250
        %v1297 = vpack.c.b16 %v1253, %v1252
        %v1298 = vpack.c.b16 %v1255, %v1254
        %v1299 = vpack.c.b16 %v1257, %v1256
        %v1300 = vpack.c.b16 %v1259, %v1258
        %v1301 = vpack.c.b16 %v1261, %v1260
        %v1302 = vpack.c.b16 %v1263, %v1262
        %v1303 = vpack.c.b16 %v1265, %v1264
        %v1304 = vpack.c.b16 %v1267, %v1266
        %v1305 = vpack.c.b16 %v1269, %v1268
        %v1306 = vpack.c.b16 %v1271, %v1270
        %v1307 = vpack.c.b16 %v1273, %v1272
        %v1308 = vpack.c.b16 %v1275, %v1274
        %v1309 = vpack.c.b16 %v1277, %v1276
        %1342 = vmatpush.bf16.msra.mxu0 %v1285
        %1343 = vmatpush.bf16.msra.mxu0 %v1284
        %1344 = vmatpush.bf16.msra.mxu0 %v1283
        %1345 = vmatpush.bf16.msra.mxu0 %v1282
        %1346 = vmatpush.bf16.msra.mxu0 %v1281
        %1347 = vmatpush.bf16.msra.mxu0 %v1280
        %1348 = vmatpush.bf16.msra.mxu0 %v1279
        %1349 = vmatpush.bf16.msra.mxu0 %v1278
        %1350 = vmatmul.bf16.gmra.mxu0 %v1075
        %v1351 = vpop.f32.mrf.mxu0
        %v1352 = vadd.f32 %v1148, %v1351
        %v1353 = vpop.f32.mrf.mxu0
        %v1354 = vadd.f32 %v1148, %v1353
        %1355 = vmatmul.bf16.gmra.mxu0 %v1079
        %v1356 = vpop.f32.mrf.mxu0
        %v1357 = vadd.f32 %v1148, %v1356
        %v1358 = vpop.f32.mrf.mxu0
        %v1359 = vadd.f32 %v1148, %v1358
        %1360 = vdwg.mxu0
        %1361 = vmatpush.bf16.msra.mxu0 %v1293
        %1362 = vmatpush.bf16.msra.mxu0 %v1292
        %1363 = vmatpush.bf16.msra.mxu0 %v1291
        %1364 = vmatpush.bf16.msra.mxu0 %v1290
        %1365 = vmatpush.bf16.msra.mxu0 %v1289
        %1366 = vmatpush.bf16.msra.mxu0 %v1288
        %1367 = vmatpush.bf16.msra.mxu0 %v1287
        %1368 = vmatpush.bf16.msra.mxu0 %v1286
        %1369 = vmatmul.bf16.gmra.mxu0 %v1076
        %v1370 = vpop.f32.mrf.mxu0
        %v1371 = vadd.f32 %v1352, %v1370
        %v1372 = vpop.f32.mrf.mxu0
        %v1373 = vadd.f32 %v1354, %v1372
        %1374 = vmatmul.bf16.gmra.mxu0 %v1080
        %v1375 = vpop.f32.mrf.mxu0
        %v1376 = vadd.f32 %v1357, %v1375
        %v1377 = vpop.f32.mrf.mxu0
        %v1378 = vadd.f32 %v1359, %v1377
        %1379 = vdwg.mxu0
        %1380 = vmatpush.bf16.msra.mxu0 %v1301
        %1381 = vmatpush.bf16.msra.mxu0 %v1300
        %1382 = vmatpush.bf16.msra.mxu0 %v1299
        %1383 = vmatpush.bf16.msra.mxu0 %v1298
        %1384 = vmatpush.bf16.msra.mxu0 %v1297
        %1385 = vmatpush.bf16.msra.mxu0 %v1296
        %1386 = vmatpush.bf16.msra.mxu0 %v1295
        %1387 = vmatpush.bf16.msra.mxu0 %v1294
        %1388 = vmatmul.bf16.gmra.mxu0 %v1077
        %v1389 = vpop.f32.mrf.mxu0
        %v1390 = vadd.f32 %v1371, %v1389
        %v1391 = vpop.f32.mrf.mxu0
        %v1392 = vadd.f32 %v1373, %v1391
        %1393 = vmatmul.bf16.gmra.mxu0 %v1081
        %v1394 = vpop.f32.mrf.mxu0
        %v1395 = vadd.f32 %v1376, %v1394
        %v1396 = vpop.f32.mrf.mxu0
        %v1397 = vadd.f32 %v1378, %v1396
        %1398 = vdwg.mxu0
        %1399 = vmatpush.bf16.msra.mxu0 %v1309
        %1400 = vmatpush.bf16.msra.mxu0 %v1308
        %1401 = vmatpush.bf16.msra.mxu0 %v1307
        %1402 = vmatpush.bf16.msra.mxu0 %v1306
        %1403 = vmatpush.bf16.msra.mxu0 %v1305
        %1404 = vmatpush.bf16.msra.mxu0 %v1304
        %1405 = vmatpush.bf16.msra.mxu0 %v1303
        %1406 = vmatpush.bf16.msra.mxu0 %v1302
        %1407 = vmatmul.bf16.gmra.mxu0 %v1078
        %v1408 = vpop.f32.mrf.mxu0
        %v1409 = vadd.f32 %v1390, %v1408
        %v1410 = vpop.f32.mrf.mxu0
        %v1411 = vadd.f32 %v1392, %v1410
        %1412 = vmatmul.bf16.gmra.mxu0 %v1082
        %v1413 = vpop.f32.mrf.mxu0
        %v1414 = vadd.f32 %v1395, %v1413
        %v1415 = vpop.f32.mrf.mxu0
        %v1416 = vadd.f32 %v1397, %v1415
        %1417 = vdwg.mxu0
        %v1418 = vmax.f32 %v1409, 0.0
        %v1419 = vmax.f32 %v1411, 0.0
        %v1420 = vmax.f32 %v1414, 0.0
        %v1421 = vmax.f32 %v1416, 0.0
        %1423 = vset.pattern.permute.xlu0 92
        %1424 = vperm.xlu0 %1423, %v257
        %v1425 = vpop.permute.xlu0 %1424
        %1428 = vset.pattern.permute.xlu0 92
        %1429 = vperm.xlu0 %1428, %v260
        %v1430 = vpop.permute.xlu0 %1429
        %1433 = vset.pattern.permute.xlu0 92
        %1434 = vperm.xlu0 %1433, %v263
        %v1435 = vpop.permute.xlu0 %1434
        %1438 = vset.pattern.permute.xlu0 92
        %1439 = vperm.xlu0 %1438, %v266
        %v1440 = vpop.permute.xlu0 %1439
        %v1442 = vmul.f32 %v1425, %v1148
        %v1443 = vmul.f32 %v1430, %v1148
        %v1444 = vmul.f32 %v1435, %v1148
        %v1445 = vmul.f32 %v1440, %v1148
        %1446 = vrot.lane.b32.xlu0 %v1148, 120
        %v1447 = vpop.permute.xlu0 %1446
        %v1449 = vadd.f32 %v1442, %v1447
        %v1450 = vadd.f32 %v1443, %v1447
        %v1451 = vadd.f32 %v1444, %v1447
        %v1452 = vadd.f32 %v1445, %v1447
        %v1453 = vmax.f32 %v1449, 0.0
        %v1454 = vmax.f32 %v1450, 0.0
        %v1455 = vmax.f32 %v1451, 0.0
        %v1456 = vmax.f32 %v1452, 0.0
        %1457 = vrot.lane.b32.xlu0 %v1148, 112
        %v1458 = vpop.permute.xlu0 %1457
        %v1460 = vmul.f32 %v1453, %v1458
        %v1461 = vmul.f32 %v1454, %v1458
        %v1462 = vmul.f32 %v1455, %v1458
        %v1463 = vmul.f32 %v1456, %v1458
        %1468 = vrot.lane.b32.xlu0 %v1460, 96
        %v1469 = vpop.permute.xlu0 %1468
        %1470 = vrot.lane.b32.xlu0 %v1461, 96
        %v1471 = vpop.permute.xlu0 %1470
        %1472 = vrot.lane.b32.xlu0 %v1462, 96
        %v1473 = vpop.permute.xlu0 %1472
        %1474 = vrot.lane.b32.xlu0 %v1463, 96
        %v1475 = vpop.permute.xlu0 %1474
        %vm1480 = vcmask 64512
        %v1481 = vsel %vm1480, %v1469, 0.0
        %1482 = vadd.xlane.f32.xlu0 %v1481
        %v1483 = vpop.xlane.xlu0 %1482
        %v1484 = vsel %vm1480, %v1471, 0.0
        %1485 = vadd.xlane.f32.xlu0 %v1484
        %v1486 = vpop.xlane.xlu0 %1485
        %v1487 = vsel %vm1480, %v1473, 0.0
        %1488 = vadd.xlane.f32.xlu0 %v1487
        %v1489 = vpop.xlane.xlu0 %1488
        %v1490 = vsel %vm1480, %v1475, 0.0
        %1491 = vadd.xlane.f32.xlu0 %v1490
        %v1492 = vpop.xlane.xlu0 %1491
        %v1493 = vadd.f32 %v1483, %v1148
        %v1494 = vadd.f32 %v1486, %v1148
        %v1495 = vadd.f32 %v1489, %v1148
        %v1496 = vadd.f32 %v1492, %v1148
        %v1497 = vmax.f32 %v1493, 0.0
        %v1498 = vmax.f32 %v1494, 0.0
        %v1499 = vmax.f32 %v1495, 0.0
        %v1500 = vmax.f32 %v1496, 0.0
        %v1501 = vmul.f32 %v1418, %v1458
        %v1502 = vmul.f32 %v1419, %v1458
        %v1503 = vmul.f32 %v1420, %v1458
        %v1504 = vmul.f32 %v1421, %v1458
        %vm1505 = vcmask 130048
        %v1506 = vsel %vm1505, %v1501, 0.0
        %1507 = vadd.xlane.f32.xlu0 %v1506
        %v1508 = vpop.xlane.xlu0 %1507
        %v1509 = vsel %vm1505, %v1502, 0.0
        %1510 = vadd.xlane.f32.xlu0 %v1509
        %v1511 = vpop.xlane.xlu0 %1510
        %v1512 = vsel %vm1505, %v1503, 0.0
        %1513 = vadd.xlane.f32.xlu0 %v1512
        %v1514 = vpop.xlane.xlu0 %1513
        %v1515 = vsel %vm1505, %v1504, 0.0
        %1516 = vadd.xlane.f32.xlu0 %v1515
        %v1517 = vpop.xlane.xlu0 %1516
        %1518 = vrot.lane.b32.xlu0 %v1148, 127
        %v1519 = vpop.permute.xlu0 %1518
        %v1521 = vmul.f32 %v1497, %v1519
        %v1522 = vmul.f32 %v1498, %v1519
        %v1523 = vmul.f32 %v1499, %v1519
        %v1524 = vmul.f32 %v1500, %v1519
        %v1525 = vadd.f32 %v1508, %v1521
        %v1526 = vadd.f32 %v1511, %v1522
        %v1527 = vadd.f32 %v1514, %v1523
        %v1528 = vadd.f32 %v1517, %v1524
        %1529 = vrot.lane.b32.xlu0 %v1148, 126
        %v1530 = vpop.permute.xlu0 %1529
        %v1532 = vadd.f32 %v1525, %v1530
        %v1533 = vadd.f32 %v1526, %v1530
        %v1534 = vadd.f32 %v1527, %v1530
        %v1535 = vadd.f32 %v1528, %v1530
        %1540 = vrot.lane.b32.xlu0 %v1532, 72
        %v1541 = vpop.permute.xlu0 %1540
        %1542 = vrot.lane.b32.xlu0 %v1533, 72
        %v1543 = vpop.permute.xlu0 %1542
        %1544 = vrot.lane.b32.xlu0 %v1534, 72
        %v1545 = vpop.permute.xlu0 %1544
        %1546 = vrot.lane.b32.xlu0 %v1535, 72
        %v1547 = vpop.permute.xlu0 %1546
        %vm1552 = vcmask 7168
        %1553 = vst.msk [vmem:[%s231] sm:$0xff] %vm1552, %v1541
        %1554 = vst.msk [vmem:[%s231 + $0x8] sm:$0xff] %vm1552, %v1543
        %1555 = vst.msk [vmem:[%s231 + $0x10] sm:$0xff] %vm1552, %v1545
        %1556 = vst.msk [vmem:[%s231 + $0x18] sm:$0xff] %vm1552, %v1547
        %s1557 = sand.u32 %s134, 1
        %s1558 = sand.u32 %s134, 1
        %s1559 = smul.addr %s1558, 32
        %s1560 = scalar_lea.vmem [#allocation2], %s1559
        // Predicated region
        $region41: #{run.1} parent=39 // pred_check
          %p1561 = pneg %p144
        $region42: #{run.1} parent=39 // pred_check_branch
          %1563 = sbr.rel (%p1561) target = $region44
        $region43: #{run.1} parent=39 // pred_region
          %s1564 = smul.u32 4, %s16
          %s1565 = ssub.s32 10, %s1564
          %p1566 = scmp.lt.s32.totalorder %s1565, 4
          %s1567 = scalar_select %p1566, %s1565, 4
          %s1568 = smul.u32 8, %s1567
          %p1569 = scmp.ne.s32.totalorder 0, %s1568
          %s1570 = smul.addr %s1564, 8
          %s1571 = scalar_lea.vmem %s5, %s1570
          // Predicated region
          $region45: #{run.1} parent=43 // pred_check
            %p1572 = pneg %p1569
          $region46: #{run.1} parent=43 // pred_check_branch
            %1574 = sbr.rel (%p1572) target = $region48
          $region47: #{run.1} parent=43 // pred_region
            // Predicated region
            $region49: #{run.1} parent=47 // pred_check
              _
            $region50: #{run.1} parent=47 // pred_check_branch
              %1576 = sbr.rel (0) target = $region52
            $region51: #{run.1} parent=47 // pred_region
              // Predicated region
              $region71: #{run.1} parent=51 // pred_check
                _
              $region72: #{run.1} parent=51 // pred_check_branch
                %1632 = sbr.rel (0) target = $region74
              $region73: #{run.1} parent=51 // pred_region
                %s1633 = sshrl.u32 %s1567, 2
                // While loop
                $region75: #{run.1} parent=73 // loop_pre_header
                  _
                $region76: #{run.1} parent=73 // loop_header
                  %s1635 = sphi 0, %s1637
                  %p1636 = scmp.ge.s32.totalorder %s1635, %s1633
                  %s1640 = sphi 0, %s1653
                  %s1641 = sphi %s1560, %s1656
                  %s1642 = sphi %s1571, %s1657
                $region77: #{run.1} parent=73 // loop_header_branch
                  %1639 = sbr.rel (%p1636) target = $region81
                $region78: #{run.1} parent=73 // loop_body
                  %v1643 = vld [vmem:[%s1641] sm:$0xff]
                  %1644 = vst [vmem:[%s1642] sm:$0xff] %v1643
                  %v1645 = vld [vmem:[%s1641 + $0x8] sm:$0xff]
                  %1646 = vst [vmem:[%s1642 + $0x8] sm:$0xff] %v1645
                  %v1647 = vld [vmem:[%s1641 + $0x10] sm:$0xff]
                  %1648 = vst [vmem:[%s1642 + $0x10] sm:$0xff] %v1647
                  %v1649 = vld [vmem:[%s1641 + $0x18] sm:$0xff]
                  %1650 = vst [vmem:[%s1642 + $0x18] sm:$0xff] %v1649
                  %s1651 = sadd.s32 1, %s1640
                  %p1652 = scmp.ge.s32.totalorder %s1651, %s1633
                  %s1653 = scalar_select %p1652, 0, %s1651
                  %s1654 = smul.u32 %s1653, 32
                  %s1655 = smul.u32 %s1653, 32
                  %s1656 = scalar_lea.vmem %s1560, %s1654 [#allocation2]
                  %s1657 = scalar_lea.vmem %s1571, %s1655
                $region79: #{run.1} parent=73 // loop_footer
                  %s1637 = sadd.s32 %s1635, 1
                $region80: #{run.1} parent=73 // loop_footer_branch
                  %1634 = sbr.rel target = $region76
                $region81: #{run.1} parent=73 // loop_exit
                  _
                %s1658 = sshrl.u32 %s1567, 2
                %s1659 = sand.u32 %s1567, 3
                %s1660 = smul.u32 %s1658, 4
                %s1661 = smul.u32 8, %s1660
                %s1662 = scalar_lea.vmem %s1560, %s1661 [#allocation2]
                %s1663 = smul.u32 8, %s1660
                %s1664 = scalar_lea.vmem %s1571, %s1663
                // While loop
                $region82: #{run.1} parent=73 // loop_pre_header
                  _
                $region83: #{run.1} parent=73 // loop_header
                  %s1666 = sphi 0, %s1668
                  %p1667 = scmp.ge.s32.totalorder %s1666, %s1659
                  %s1671 = sphi 0, %s1678
                  %s1672 = sphi %s1662, %s1681
                  %s1673 = sphi %s1664, %s1682
                $region84: #{run.1} parent=73 // loop_header_branch
                  %1670 = sbr.rel (%p1667) target = $region88
                $region85: #{run.1} parent=73 // loop_body
                  %v1674 = vld [vmem:[%s1672] sm:$0xff]
                  %1675 = vst [vmem:[%s1673] sm:$0xff] %v1674
                  %s1676 = sadd.s32 1, %s1671
                  %p1677 = scmp.ge.s32.totalorder %s1676, %s1659
                  %s1678 = scalar_select %p1677, 0, %s1676
                  %s1679 = smul.u32 %s1678, 8
                  %s1680 = smul.u32 %s1678, 8
                  %s1681 = scalar_lea.vmem %s1662, %s1679 [#allocation2]
                  %s1682 = scalar_lea.vmem %s1664, %s1680
                $region86: #{run.1} parent=73 // loop_footer
                  %s1668 = sadd.s32 %s1666, 1
                $region87: #{run.1} parent=73 // loop_footer_branch
                  %1665 = sbr.rel target = $region83
                $region88: #{run.1} parent=73 // loop_exit
                  _
              $region74: #{run.1} parent=51 // pred_fallthru
                _
              // Predicated region
              $region89: #{run.1} parent=51 // pred_check
                _
              $region90: #{run.1} parent=51 // pred_check_branch
                %1684 = sbr.rel target = $region92
              $region91: #{run.1} parent=51 // pred_region
                _
              $region92: #{run.1} parent=51 // pred_fallthru
                _
            $region52: #{run.1} parent=47 // pred_fallthru
              _
            // Predicated region
            $region53: #{run.1} parent=47 // pred_check
              _
            $region54: #{run.1} parent=47 // pred_check_branch
              %1578 = sbr.rel target = $region56
            $region55: #{run.1} parent=47 // pred_region
              %s1580 = ssub.s32 256, 1
              %s1581 = sshrl.u32 %s1567, 2
              // While loop
              $region57: #{run.1} parent=55 // loop_pre_header
                _
              $region58: #{run.1} parent=55 // loop_header
                %s1583 = sphi 0, %s1585
                %p1584 = scmp.ge.s32.totalorder %s1583, %s1581
                %s1588 = sphi 0, %s1601
                %s1589 = sphi %s1560, %s1604
                %s1590 = sphi %s1571, %s1605
              $region59: #{run.1} parent=55 // loop_header_branch
                %1587 = sbr.rel (%p1584) target = $region63
              $region60: #{run.1} parent=55 // loop_body
                %v1591 = vld [vmem:[%s1589] sm:%s1580]
                %1592 = vst [vmem:[%s1590] sm:%s1580] %v1591
                %v1593 = vld [vmem:[%s1589 + $0x8] sm:%s1580]
                %1594 = vst [vmem:[%s1590 + $0x8] sm:%s1580] %v1593
                %v1595 = vld [vmem:[%s1589 + $0x10] sm:%s1580]
                %1596 = vst [vmem:[%s1590 + $0x10] sm:%s1580] %v1595
                %v1597 = vld [vmem:[%s1589 + $0x18] sm:%s1580]
                %1598 = vst [vmem:[%s1590 + $0x18] sm:%s1580] %v1597
                %s1599 = sadd.s32 1, %s1588
                %p1600 = scmp.ge.s32.totalorder %s1599, %s1581
                %s1601 = scalar_select %p1600, 0, %s1599
                %s1602 = smul.u32 %s1601, 32
                %s1603 = smul.u32 %s1601, 32
                %s1604 = scalar_lea.vmem %s1560, %s1602 [#allocation2]
                %s1605 = scalar_lea.vmem %s1571, %s1603
              $region61: #{run.1} parent=55 // loop_footer
                %s1585 = sadd.s32 %s1583, 1
              $region62: #{run.1} parent=55 // loop_footer_branch
                %1582 = sbr.rel target = $region58
              $region63: #{run.1} parent=55 // loop_exit
                _
              %s1606 = sshrl.u32 %s1567, 2
              %s1607 = sand.u32 %s1567, 3
              %s1608 = smul.u32 %s1606, 4
              %s1609 = smul.u32 8, %s1608
              %s1610 = scalar_lea.vmem %s1560, %s1609 [#allocation2]
              %s1611 = smul.u32 8, %s1608
              %s1612 = scalar_lea.vmem %s1571, %s1611
              // While loop
              $region64: #{run.1} parent=55 // loop_pre_header
                _
              $region65: #{run.1} parent=55 // loop_header
                %s1614 = sphi 0, %s1616
                %p1615 = scmp.ge.s32.totalorder %s1614, %s1607
                %s1619 = sphi 0, %s1626
                %s1620 = sphi %s1610, %s1629
                %s1621 = sphi %s1612, %s1630
              $region66: #{run.1} parent=55 // loop_header_branch
                %1618 = sbr.rel (%p1615) target = $region70
              $region67: #{run.1} parent=55 // loop_body
                %v1622 = vld [vmem:[%s1620] sm:%s1580]
                %1623 = vst [vmem:[%s1621] sm:%s1580] %v1622
                %s1624 = sadd.s32 1, %s1619
                %p1625 = scmp.ge.s32.totalorder %s1624, %s1607
                %s1626 = scalar_select %p1625, 0, %s1624
                %s1627 = smul.u32 %s1626, 8
                %s1628 = smul.u32 %s1626, 8
                %s1629 = scalar_lea.vmem %s1610, %s1627 [#allocation2]
                %s1630 = scalar_lea.vmem %s1612, %s1628
              $region68: #{run.1} parent=55 // loop_footer
                %s1616 = sadd.s32 %s1614, 1
              $region69: #{run.1} parent=55 // loop_footer_branch
                %1613 = sbr.rel target = $region65
              $region70: #{run.1} parent=55 // loop_exit
                _
            $region56: #{run.1} parent=47 // pred_fallthru
              _
          $region48: #{run.1} parent=43 // pred_fallthru
            _
          %1685 = vnop
        $region44: #{run.1} parent=39 // pred_fallthru
          _
      $region40: #{run.1} parent=5 // pred_fallthru
        _
      %p1686 = scmp.le.s32.totalorder 2, %s11
      // Predicated region
      $region93: #{run.1} parent=5 // pred_check
        %p1687 = pneg %p1686
      $region94: #{run.1} parent=5 // pred_check_branch
        %1689 = sbr.rel (%p1687) target = $region96
      $region95: #{run.1} parent=5 // pred_region
        %s1690 = ssub.s32 %s11, 2
        // Predicated region
        $region97: #{run.1} parent=95 // pred_check
          %p1691 = pneg %p150
        $region98: #{run.1} parent=95 // pred_check_branch
          %1693 = sbr.rel (%p1691) target = $region100
        $region99: #{run.1} parent=95 // pred_region
          %s1694 = sand.u32 %s135, 1
          %s1695 = sand.u32 %s135, 1
          %s1696 = smul.addr %s1695, 32
          %s1697 = scalar_lea.vmem [#allocation2], %s1696
        $region100: #{run.1} parent=95 // pred_fallthru
          _
      $region96: #{run.1} parent=5 // pred_fallthru
        _
    $region6: #{run.1} parent=1 // loop_footer
      %s15 = sadd.s32 1, %s11
    $region7: #{run.1} parent=1 // loop_footer_branch
      %10 = sbr.rel target = $region3
    $region8: #{run.1} parent=1 // loop_exit
      _

</llo_original>
